<compile_context>
chip_gen: v7x
topology: tpu7x:2x2x1
jax: 0.10.0
libtpu: 0.0.40
codegen_flags: <defaults>
</compile_context>

<pallas_src>
import jax
import jax.numpy as jnp
from jax.experimental import pallas as pl
from jax.experimental.pallas import tpu as pltpu


def decoder_gru_kernel(emb_ref,     # VMEM (T, H)   pre-gathered embedding rows
                       h0_ref,      # VMEM (1, H)   initial hidden
                       w_big_ref,   # VMEM (2H, 4H) [[w_ih^T | 0], [w_hh^T | w_hn]]
                       b_big_ref,   # VMEM (1, 4H)  [b_ih + b_hh | b_hn]
                       w_out_ref,   # VMEM (H, V)   out.weight^T
                       b_out_ref,   # VMEM (1, V)   out.bias
                       logp_ref,    # VMEM (T, V)   per-step log-probs (output)
                       h_out_ref,   # VMEM (1, H)   final hidden (output)
                       h_all_ref):  # VMEM (T, H)   scratch: all hidden states
    T, H = emb_ref.shape

    w_big = w_big_ref[...]          # resident for the whole call
    b_big = b_big_ref[...]

    def step(t, h):
        # ReLU(embedding(token_t)); row already in VMEM.
        x = jnp.maximum(emb_ref[pl.ds(t, 1), :], 0.0)                # (1, H)
        # Single MXU push: [x | h] @ [[w_ih^T | 0], [w_hh^T | w_hn]].
        xh = jnp.concatenate([x, h], axis=1)                         # (1, 2H)
        s = jnp.dot(xh, w_big,
                    preferred_element_type=jnp.float32) + b_big      # (1, 4H)
        r = jax.nn.sigmoid(s[:, 0:H])
        z = jax.nn.sigmoid(s[:, H:2 * H])
        ghn = s[:, 3 * H:4 * H]                                      # gh_n + b_hn
        # tanh(gi_n + b_in + r*(gh_n + b_hn)) == tanh(s_n + (r-1)*ghn)
        n = jnp.tanh(s[:, 2 * H:3 * H] + (r - 1.0) * ghn)
        h_new = (1.0 - z) * n + z * h                                # (1, H)
        h_all_ref[pl.ds(t, 1), :] = h_new
        return h_new

    h_fin = jax.lax.fori_loop(0, T, step, h0_ref[...], unroll=True)
    h_out_ref[...] = h_fin.astype(h_out_ref.dtype)

    # Batched output head: one (T,H)@(H,V) matmul + row-wise log_softmax.
    hs = h_all_ref[...]                                              # (T, H)
    logits = jnp.dot(hs, w_out_ref[...],
                     preferred_element_type=jnp.float32) + b_out_ref[...]   # (T, V)
    m = jnp.max(logits, axis=-1, keepdims=True)
    lse = jnp.log(jnp.sum(jnp.exp(logits - m), axis=-1, keepdims=True)) + m
    logp_ref[...] = (logits - lse).astype(logp_ref.dtype)


def decode_sequence(tokens, hidden0, params):
    """Run T teacher-forced DecoderRNN steps in ONE pallas_call invocation.

    tokens: (T,) int32, hidden0: (1, 1, H) f32
    returns: (log_probs (T, V) f32, final hidden (1, 1, H) f32)
    Row t of the output equals DecoderRNN.forward(tokens[t], hidden_t).
    """
    emb = params["embedding"]                            # (V, H)
    V, H = emb.shape

    # Merged GRU weights: [x | h] @ [[w_ih^T | 0], [w_hh^T | w_hn]] -> (1, 4H)
    w_ih_t = params["w_ih"].T                            # (H, 3H)
    w_hh_t = params["w_hh"].T                            # (H, 3H)
    w_hn = w_hh_t[:, 2 * H:3 * H]                        # (H, H)
    w_big = jnp.concatenate(
        [jnp.concatenate([w_ih_t, jnp.zeros((H, H), jnp.float32)], axis=1),
         jnp.concatenate([w_hh_t, w_hn], axis=1)], axis=0)           # (2H, 4H)
    b_big = jnp.concatenate(
        [params["b_ih"] + params["b_hh"], params["b_hh"][2 * H:]]
    ).reshape(1, 4 * H)

    w_out_t = params["w_out"].T                          # (H, V)
    b_out = params["b_out"].reshape(1, V)

    toks = jnp.asarray(tokens, jnp.int32).reshape(-1)
    T = int(toks.shape[0])
    emb_rows = emb[toks].astype(jnp.float32)             # (T, H) gathered once, in XLA
    h0 = hidden0.reshape(1, H).astype(jnp.float32)

    grid_spec = pltpu.PrefetchScalarGridSpec(
        num_scalar_prefetch=0,
        grid=(1,),                                       # single invocation; loop in-kernel
        in_specs=[
            pl.BlockSpec((T, H), lambda i: (0, 0)),          # embedding rows
            pl.BlockSpec((1, H), lambda i: (0, 0)),          # h0
            pl.BlockSpec((2 * H, 4 * H), lambda i: (0, 0)),  # merged GRU weight
            pl.BlockSpec((1, 4 * H), lambda i: (0, 0)),      # merged GRU bias
            pl.BlockSpec((H, V), lambda i: (0, 0)),          # out.weight^T
            pl.BlockSpec((1, V), lambda i: (0, 0)),          # out.bias
        ],
        out_specs=[
            pl.BlockSpec((T, V), lambda i: (0, 0)),          # all log-probs at once
            pl.BlockSpec((1, H), lambda i: (0, 0)),          # final hidden
        ],
        scratch_shapes=[pltpu.VMEM((T, H), jnp.float32)],    # all hidden states
    )

    logp, h_fin = pl.pallas_call(
        decoder_gru_kernel,
        grid_spec=grid_spec,
        out_shape=(jax.ShapeDtypeStruct((T, V), jnp.float32),
                   jax.ShapeDtypeStruct((1, H), jnp.float32)),
        compiler_params=pltpu.CompilerParams(
            dimension_semantics=("arbitrary",),
            vmem_limit_bytes=32 * 1024 * 1024),
    )(emb_rows, h0, w_big, b_big, w_out_t, b_out)

    return logp, h_fin.reshape(1, 1, H)


def decoder_rnn_forward(token, hidden, params):
    """Single DecoderRNN.forward step: returns (log_probs (1, V), hidden (1, 1, H))."""
    logp, h_new = decode_sequence(jnp.asarray(token, jnp.int32).reshape(1), hidden, params)
    return logp, h_new


# ----------------------------- pure-JAX reference -----------------------------

def ref_forward(token, hidden, params):
    """Matches PyTorch DecoderRNN.forward semantics (f32)."""
    H = params["embedding"].shape[1]
    x = jnp.maximum(params["embedding"][token].reshape(1, H), 0.0)     # relu(embed)
    h = hidden.reshape(1, H)
    gi = x @ params["w_ih"].T + params["b_ih"]
    gh = h @ params["w_hh"].T + params["b_hh"]
    r = jax.nn.sigmoid(gi[:, :H] + gh[:, :H])
    z = jax.nn.sigmoid(gi[:, H:2 * H] + gh[:, H:2 * H])
    n = jnp.tanh(gi[:, 2 * H:] + r * gh[:, 2 * H:])
    h_new = (1.0 - z) * n + z * h
    logits = h_new @ params["w_out"].T + params["b_out"]
    logp = jax.nn.log_softmax(logits, axis=1)
    return logp, h_new.reshape(1, 1, H)


def ref_decode_sequence(tokens, hidden0, params):
    logps = []
    h = hidden0
    for t in range(tokens.shape[0]):
        lp, h = ref_forward(int(tokens[t]), h, params)
        logps.append(lp)
    return jnp.concatenate(logps, axis=0), h


def init_params(key, hidden_size, output_size):
    """PyTorch-shaped params: embedding (V,H)~N(0,1); GRU (3H,H)/(3H,) and
       Linear (V,H)/(V,) ~ U(-1/sqrt(H), 1/sqrt(H))."""
    k_emb, k_wi, k_wh, k_bi, k_bh, k_wo, k_bo = jax.random.split(key, 7)
    bound = 1.0 / jnp.sqrt(hidden_size)
    return {
        "embedding": jax.random.normal(k_emb, (output_size, hidden_size), jnp.float32),
        "w_ih": jax.random.uniform(k_wi, (3 * hidden_size, hidden_size), jnp.float32,
                                   -bound, bound),
        "w_hh": jax.random.uniform(k_wh, (3 * hidden_size, hidden_size), jnp.float32,
                                   -bound, bound),
        "b_ih": jax.random.uniform(k_bi, (3 * hidden_size,), jnp.float32, -bound, bound),
        "b_hh": jax.random.uniform(k_bh, (3 * hidden_size,), jnp.float32, -bound, bound),
        "w_out": jax.random.uniform(k_wo, (output_size, hidden_size), jnp.float32,
                                    -bound, bound),
        "b_out": jax.random.uniform(k_bo, (output_size,), jnp.float32, -bound, bound),
    }


if __name__ == "__main__":
    HIDDEN_SIZE = 128    # lane-dense: H=128, 2H=256, 4H=512
    OUTPUT_SIZE = 256    # vocab size (Linear/log_softmax width)
    T = 8                # fused decode steps = one full f32 sublane tile

    key = jax.random.PRNGKey(0)
    params = init_params(key, HIDDEN_SIZE, OUTPUT_SIZE)

    tokens = jax.random.randint(jax.random.PRNGKey(1), (T,), 0, OUTPUT_SIZE, jnp.int32)
    hidden0 = jnp.zeros((1, 1, HIDDEN_SIZE), jnp.float32)   # initHidden()

    # Fused multi-step decode (single pallas_call, unrolled in-kernel loop).
    logp_seq, h_final = decode_sequence(tokens, hidden0, params)
    logp_seq = jax.block_until_ready(logp_seq)
    h_final = jax.block_until_ready(h_final)

    logp_ref, h_ref = ref_decode_sequence(tokens, hidden0, params)
    assert logp_seq.shape == (T, OUTPUT_SIZE)
    assert h_final.shape == (1, 1, HIDDEN_SIZE)
    assert jnp.allclose(logp_seq, logp_ref, atol=2e-4, rtol=2e-4)
    assert jnp.allclose(h_final, h_ref, atol=2e-4, rtol=2e-4)

    # Single-step API (matches DecoderRNN.forward exactly).
    logp1, h1 = decoder_rnn_forward(int(tokens[0]), hidden0, params)
    logp1 = jax.block_until_ready(logp1)
    logp1_ref, h1_ref = ref_forward(int(tokens[0]), hidden0, params)
    assert logp1.shape == (1, OUTPUT_SIZE) and h1.shape == (1, 1, HIDDEN_SIZE)
    assert jnp.allclose(logp1, logp1_ref, atol=2e-4, rtol=2e-4)
    assert jnp.allclose(h1, h1_ref, atol=2e-4, rtol=2e-4)

    print("KERNEL_OK")
</pallas_src>

<mosaic_0001>
module attributes {stable_mosaic.version = 11 : i64} {
  func.func @decoder_gru_kernel(%arg0: i32, %arg1: memref<8x128xf32, #tpu.memory_space<vmem>>, %arg2: memref<1x128xf32, #tpu.memory_space<vmem>>, %arg3: memref<256x512xf32, #tpu.memory_space<vmem>>, %arg4: memref<1x512xf32, #tpu.memory_space<vmem>>, %arg5: memref<128x256xf32, #tpu.memory_space<vmem>>, %arg6: memref<1x256xf32, #tpu.memory_space<vmem>>, %arg7: memref<8x256xf32, #tpu.memory_space<vmem>>, %arg8: memref<1x128xf32, #tpu.memory_space<vmem>>, %arg9: memref<8x128xf32, #tpu.memory_space<vmem>>) attributes {dimension_semantics = [#tpu.dimension_semantics<arbitrary>], iteration_bounds = array<i64: 1>, scalar_prefetch = 0 : i64, scratch_operands = 1 : i64, tpu.core_type = #tpu.core_type<tc>, window_params = [{pipeline_mode = #tpu.pipeline_mode<synchronous>, transform_indices = @transform_0, window_bounds = array<i64: 8, 128>}, {pipeline_mode = #tpu.pipeline_mode<synchronous>, transform_indices = @transform_1, window_bounds = array<i64: 1, 128>}, {pipeline_mode = #tpu.pipeline_mode<synchronous>, transform_indices = @transform_2, window_bounds = array<i64: 256, 512>}, {pipeline_mode = #tpu.pipeline_mode<synchronous>, transform_indices = @transform_3, window_bounds = array<i64: 1, 512>}, {pipeline_mode = #tpu.pipeline_mode<synchronous>, transform_indices = @transform_4, window_bounds = array<i64: 128, 256>}, {pipeline_mode = #tpu.pipeline_mode<synchronous>, transform_indices = @transform_5, window_bounds = array<i64: 1, 256>}, {pipeline_mode = #tpu.pipeline_mode<synchronous>, transform_indices = @transform_6, window_bounds = array<i64: 8, 256>}, {pipeline_mode = #tpu.pipeline_mode<synchronous>, transform_indices = @transform_7, window_bounds = array<i64: 1, 128>}]} {
    %c0 = arith.constant 0 : index
    %c0_0 = arith.constant 0 : index
    %0 = vector.load %arg3[%c0, %c0_0] : memref<256x512xf32, #tpu.memory_space<vmem>>, vector<256x512xf32>
    %c0_1 = arith.constant 0 : index
    %c0_2 = arith.constant 0 : index
    %1 = vector.load %arg4[%c0_1, %c0_2] : memref<1x512xf32, #tpu.memory_space<vmem>>, vector<1x512xf32>
    %c0_3 = arith.constant 0 : index
    %c0_4 = arith.constant 0 : index
    %2 = vector.load %arg2[%c0_3, %c0_4] : memref<1x128xf32, #tpu.memory_space<vmem>>, vector<1x128xf32>
    %c0_i32 = arith.constant 0 : i32
    %3 = arith.index_cast %c0_i32 : i32 to index
    %c0_5 = arith.constant 0 : index
    %4 = vector.load %arg1[%3, %c0_5] : memref<8x128xf32, #tpu.memory_space<vmem>>, vector<1x128xf32>
    %cst = arith.constant 0.000000e+00 : f32
    %5 = vector.broadcast %cst : f32 to vector<1x128xf32>
    %6 = arith.maximumf %4, %5 : vector<1x128xf32>
    %7 = tpu.concatenate %6, %2 in 1 : vector<1x128xf32>, vector<1x128xf32> -> vector<1x256xf32>
    %cst_6 = arith.constant dense<0.000000e+00> : vector<1x512xf32>
    %8 = tpu.matmul %7, %0, %cst_6 {dimension_numbers = #tpu.dot_dimension_numbers<[1], [0], [0], [1], [0, 0, 1, 1], [], []>} : vector<1x256xf32>, vector<256x512xf32>, vector<1x512xf32> -> vector<1x512xf32>
    %9 = arith.addf %8, %1 : vector<1x512xf32>
    %10 = vector.extract_strided_slice %9 {offsets = [0, 0], sizes = [1, 128], strides = [1, 1]} : vector<1x512xf32> to vector<1x128xf32>
    %11 = arith.negf %10 : vector<1x128xf32>
    %12 = math.exp %11 : vector<1x128xf32>
    %cst_7 = arith.constant 1.000000e+00 : f32
    %13 = vector.broadcast %cst_7 : f32 to vector<1x128xf32>
    %14 = arith.addf %13, %12 : vector<1x128xf32>
    %15 = arith.divf %13, %14 : vector<1x128xf32>
    %16 = vector.extract_strided_slice %9 {offsets = [0, 128], sizes = [1, 128], strides = [1, 1]} : vector<1x512xf32> to vector<1x128xf32>
    %17 = arith.negf %16 : vector<1x128xf32>
    %18 = math.exp %17 : vector<1x128xf32>
    %cst_8 = arith.constant 1.000000e+00 : f32
    %19 = vector.broadcast %cst_8 : f32 to vector<1x128xf32>
    %20 = arith.addf %19, %18 : vector<1x128xf32>
    %21 = arith.divf %19, %20 : vector<1x128xf32>
    %22 = vector.extract_strided_slice %9 {offsets = [0, 384], sizes = [1, 128], strides = [1, 1]} : vector<1x512xf32> to vector<1x128xf32>
    %23 = vector.extract_strided_slice %9 {offsets = [0, 256], sizes = [1, 128], strides = [1, 1]} : vector<1x512xf32> to vector<1x128xf32>
    %cst_9 = arith.constant 1.000000e+00 : f32
    %24 = vector.broadcast %cst_9 : f32 to vector<1x128xf32>
    %25 = arith.subf %15, %24 : vector<1x128xf32>
    %26 = arith.mulf %25, %22 : vector<1x128xf32>
    %27 = arith.addf %23, %26 : vector<1x128xf32>
    %28 = math.tanh %27 : vector<1x128xf32>
    %cst_10 = arith.constant 1.000000e+00 : f32
    %29 = vector.broadcast %cst_10 : f32 to vector<1x128xf32>
    %30 = arith.subf %29, %21 : vector<1x128xf32>
    %31 = arith.mulf %30, %28 : vector<1x128xf32>
    %32 = arith.mulf %21, %2 : vector<1x128xf32>
    %33 = arith.addf %31, %32 : vector<1x128xf32>
    %34 = arith.index_cast %c0_i32 : i32 to index
    %c0_11 = arith.constant 0 : index
    %35 = vector.load %arg9[%34, %c0_11] : memref<8x128xf32, #tpu.memory_space<vmem>>, vector<1x128xf32>
    tpu.vector_store %arg9[%34, %c0_11], %33 {strides = array<i32>} : memref<8x128xf32, #tpu.memory_space<vmem>>, vector<1x128xf32>,
    %c1_i32 = arith.constant 1 : i32
    %36 = arith.index_cast %c1_i32 : i32 to index
    %c0_12 = arith.constant 0 : index
    %37 = vector.load %arg1[%36, %c0_12] : memref<8x128xf32, #tpu.memory_space<vmem>>, vector<1x128xf32>
    %cst_13 = arith.constant 0.000000e+00 : f32
    %38 = vector.broadcast %cst_13 : f32 to vector<1x128xf32>
    %39 = arith.maximumf %37, %38 : vector<1x128xf32>
    %40 = tpu.concatenate %39, %33 in 1 : vector<1x128xf32>, vector<1x128xf32> -> vector<1x256xf32>
    %cst_14 = arith.constant dense<0.000000e+00> : vector<1x512xf32>
    %41 = tpu.matmul %40, %0, %cst_14 {dimension_numbers = #tpu.dot_dimension_numbers<[1], [0], [0], [1], [0, 0, 1, 1], [], []>} : vector<1x256xf32>, vector<256x512xf32>, vector<1x512xf32> -> vector<1x512xf32>
    %42 = arith.addf %41, %1 : vector<1x512xf32>
    %43 = vector.extract_strided_slice %42 {offsets = [0, 0], sizes = [1, 128], strides = [1, 1]} : vector<1x512xf32> to vector<1x128xf32>
    %44 = arith.negf %43 : vector<1x128xf32>
    %45 = math.exp %44 : vector<1x128xf32>
    %cst_15 = arith.constant 1.000000e+00 : f32
    %46 = vector.broadcast %cst_15 : f32 to vector<1x128xf32>
    %47 = arith.addf %46, %45 : vector<1x128xf32>
    %48 = arith.divf %46, %47 : vector<1x128xf32>
    %49 = vector.extract_strided_slice %42 {offsets = [0, 128], sizes = [1, 128], strides = [1, 1]} : vector<1x512xf32> to vector<1x128xf32>
    %50 = arith.negf %49 : vector<1x128xf32>
    %51 = math.exp %50 : vector<1x128xf32>
    %cst_16 = arith.constant 1.000000e+00 : f32
    %52 = vector.broadcast %cst_16 : f32 to vector<1x128xf32>
    %53 = arith.addf %52, %51 : vector<1x128xf32>
    %54 = arith.divf %52, %53 : vector<1x128xf32>
    %55 = vector.extract_strided_slice %42 {offsets = [0, 384], sizes = [1, 128], strides = [1, 1]} : vector<1x512xf32> to vector<1x128xf32>
    %56 = vector.extract_strided_slice %42 {offsets = [0, 256], sizes = [1, 128], strides = [1, 1]} : vector<1x512xf32> to vector<1x128xf32>
    %cst_17 = arith.constant 1.000000e+00 : f32
    %57 = vector.broadcast %cst_17 : f32 to vector<1x128xf32>
    %58 = arith.subf %48, %57 : vector<1x128xf32>
    %59 = arith.mulf %58, %55 : vector<1x128xf32>
    %60 = arith.addf %56, %59 : vector<1x128xf32>
    %61 = math.tanh %60 : vector<1x128xf32>
    %cst_18 = arith.constant 1.000000e+00 : f32
    %62 = vector.broadcast %cst_18 : f32 to vector<1x128xf32>
    %63 = arith.subf %62, %54 : vector<1x128xf32>
    %64 = arith.mulf %63, %61 : vector<1x128xf32>
    %65 = arith.mulf %54, %33 : vector<1x128xf32>
    %66 = arith.addf %64, %65 : vector<1x128xf32>
    %67 = arith.index_cast %c1_i32 : i32 to index
    %c0_19 = arith.constant 0 : index
    %68 = vector.load %arg9[%67, %c0_19] : memref<8x128xf32, #tpu.memory_space<vmem>>, vector<1x128xf32>
    tpu.vector_store %arg9[%67, %c0_19], %66 {strides = array<i32>} : memref<8x128xf32, #tpu.memory_space<vmem>>, vector<1x128xf32>,
    %c2_i32 = arith.constant 2 : i32
    %69 = arith.index_cast %c2_i32 : i32 to index
    %c0_20 = arith.constant 0 : index
    %70 = vector.load %arg1[%69, %c0_20] : memref<8x128xf32, #tpu.memory_space<vmem>>, vector<1x128xf32>
    %cst_21 = arith.constant 0.000000e+00 : f32
    %71 = vector.broadcast %cst_21 : f32 to vector<1x128xf32>
    %72 = arith.maximumf %70, %71 : vector<1x128xf32>
    %73 = tpu.concatenate %72, %66 in 1 : vector<1x128xf32>, vector<1x128xf32> -> vector<1x256xf32>
    %cst_22 = arith.constant dense<0.000000e+00> : vector<1x512xf32>
    %74 = tpu.matmul %73, %0, %cst_22 {dimension_numbers = #tpu.dot_dimension_numbers<[1], [0], [0], [1], [0, 0, 1, 1], [], []>} : vector<1x256xf32>, vector<256x512xf32>, vector<1x512xf32> -> vector<1x512xf32>
    %75 = arith.addf %74, %1 : vector<1x512xf32>
    %76 = vector.extract_strided_slice %75 {offsets = [0, 0], sizes = [1, 128], strides = [1, 1]} : vector<1x512xf32> to vector<1x128xf32>
    %77 = arith.negf %76 : vector<1x128xf32>
    %78 = math.exp %77 : vector<1x128xf32>
    %cst_23 = arith.constant 1.000000e+00 : f32
    %79 = vector.broadcast %cst_23 : f32 to vector<1x128xf32>
    %80 = arith.addf %79, %78 : vector<1x128xf32>
    %81 = arith.divf %79, %80 : vector<1x128xf32>
    %82 = vector.extract_strided_slice %75 {offsets = [0, 128], sizes = [1, 128], strides = [1, 1]} : vector<1x512xf32> to vector<1x128xf32>
    %83 = arith.negf %82 : vector<1x128xf32>
    %84 = math.exp %83 : vector<1x128xf32>
    %cst_24 = arith.constant 1.000000e+00 : f32
    %85 = vector.broadcast %cst_24 : f32 to vector<1x128xf32>
    %86 = arith.addf %85, %84 : vector<1x128xf32>
    %87 = arith.divf %85, %86 : vector<1x128xf32>
    %88 = vector.extract_strided_slice %75 {offsets = [0, 384], sizes = [1, 128], strides = [1, 1]} : vector<1x512xf32> to vector<1x128xf32>
    %89 = vector.extract_strided_slice %75 {offsets = [0, 256], sizes = [1, 128], strides = [1, 1]} : vector<1x512xf32> to vector<1x128xf32>
    %cst_25 = arith.constant 1.000000e+00 : f32
    %90 = vector.broadcast %cst_25 : f32 to vector<1x128xf32>
    %91 = arith.subf %81, %90 : vector<1x128xf32>
    %92 = arith.mulf %91, %88 : vector<1x128xf32>
    %93 = arith.addf %89, %92 : vector<1x128xf32>
    %94 = math.tanh %93 : vector<1x128xf32>
    %cst_26 = arith.constant 1.000000e+00 : f32
    %95 = vector.broadcast %cst_26 : f32 to vector<1x128xf32>
    %96 = arith.subf %95, %87 : vector<1x128xf32>
    %97 = arith.mulf %96, %94 : vector<1x128xf32>
    %98 = arith.mulf %87, %66 : vector<1x128xf32>
    %99 = arith.addf %97, %98 : vector<1x128xf32>
    %100 = arith.index_cast %c2_i32 : i32 to index
    %c0_27 = arith.constant 0 : index
    %101 = vector.load %arg9[%100, %c0_27] : memref<8x128xf32, #tpu.memory_space<vmem>>, vector<1x128xf32>
    tpu.vector_store %arg9[%100, %c0_27], %99 {strides = array<i32>} : memref<8x128xf32, #tpu.memory_space<vmem>>, vector<1x128xf32>,
    %c3_i32 = arith.constant 3 : i32
    %102 = arith.index_cast %c3_i32 : i32 to index
    %c0_28 = arith.constant 0 : index
    %103 = vector.load %arg1[%102, %c0_28] : memref<8x128xf32, #tpu.memory_space<vmem>>, vector<1x128xf32>
    %cst_29 = arith.constant 0.000000e+00 : f32
    %104 = vector.broadcast %cst_29 : f32 to vector<1x128xf32>
    %105 = arith.maximumf %103, %104 : vector<1x128xf32>
    %106 = tpu.concatenate %105, %99 in 1 : vector<1x128xf32>, vector<1x128xf32> -> vector<1x256xf32>
    %cst_30 = arith.constant dense<0.000000e+00> : vector<1x512xf32>
    %107 = tpu.matmul %106, %0, %cst_30 {dimension_numbers = #tpu.dot_dimension_numbers<[1], [0], [0], [1], [0, 0, 1, 1], [], []>} : vector<1x256xf32>, vector<256x512xf32>, vector<1x512xf32> -> vector<1x512xf32>
    %108 = arith.addf %107, %1 : vector<1x512xf32>
    %109 = vector.extract_strided_slice %108 {offsets = [0, 0], sizes = [1, 128], strides = [1, 1]} : vector<1x512xf32> to vector<1x128xf32>
    %110 = arith.negf %109 : vector<1x128xf32>
    %111 = math.exp %110 : vector<1x128xf32>
    %cst_31 = arith.constant 1.000000e+00 : f32
    %112 = vector.broadcast %cst_31 : f32 to vector<1x128xf32>
    %113 = arith.addf %112, %111 : vector<1x128xf32>
    %114 = arith.divf %112, %113 : vector<1x128xf32>
    %115 = vector.extract_strided_slice %108 {offsets = [0, 128], sizes = [1, 128], strides = [1, 1]} : vector<1x512xf32> to vector<1x128xf32>
    %116 = arith.negf %115 : vector<1x128xf32>
    %117 = math.exp %116 : vector<1x128xf32>
    %cst_32 = arith.constant 1.000000e+00 : f32
    %118 = vector.broadcast %cst_32 : f32 to vector<1x128xf32>
    %119 = arith.addf %118, %117 : vector<1x128xf32>
    %120 = arith.divf %118, %119 : vector<1x128xf32>
    %121 = vector.extract_strided_slice %108 {offsets = [0, 384], sizes = [1, 128], strides = [1, 1]} : vector<1x512xf32> to vector<1x128xf32>
    %122 = vector.extract_strided_slice %108 {offsets = [0, 256], sizes = [1, 128], strides = [1, 1]} : vector<1x512xf32> to vector<1x128xf32>
    %cst_33 = arith.constant 1.000000e+00 : f32
    %123 = vector.broadcast %cst_33 : f32 to vector<1x128xf32>
    %124 = arith.subf %114, %123 : vector<1x128xf32>
    %125 = arith.mulf %124, %121 : vector<1x128xf32>
    %126 = arith.addf %122, %125 : vector<1x128xf32>
    %127 = math.tanh %126 : vector<1x128xf32>
    %cst_34 = arith.constant 1.000000e+00 : f32
    %128 = vector.broadcast %cst_34 : f32 to vector<1x128xf32>
    %129 = arith.subf %128, %120 : vector<1x128xf32>
    %130 = arith.mulf %129, %127 : vector<1x128xf32>
    %131 = arith.mulf %120, %99 : vector<1x128xf32>
    %132 = arith.addf %130, %131 : vector<1x128xf32>
    %133 = arith.index_cast %c3_i32 : i32 to index
    %c0_35 = arith.constant 0 : index
    %134 = vector.load %arg9[%133, %c0_35] : memref<8x128xf32, #tpu.memory_space<vmem>>, vector<1x128xf32>
    tpu.vector_store %arg9[%133, %c0_35], %132 {strides = array<i32>} : memref<8x128xf32, #tpu.memory_space<vmem>>, vector<1x128xf32>,
    %c4_i32 = arith.constant 4 : i32
    %135 = arith.index_cast %c4_i32 : i32 to index
    %c0_36 = arith.constant 0 : index
    %136 = vector.load %arg1[%135, %c0_36] : memref<8x128xf32, #tpu.memory_space<vmem>>, vector<1x128xf32>
    %cst_37 = arith.constant 0.000000e+00 : f32
    %137 = vector.broadcast %cst_37 : f32 to vector<1x128xf32>
    %138 = arith.maximumf %136, %137 : vector<1x128xf32>
    %139 = tpu.concatenate %138, %132 in 1 : vector<1x128xf32>, vector<1x128xf32> -> vector<1x256xf32>
    %cst_38 = arith.constant dense<0.000000e+00> : vector<1x512xf32>
    %140 = tpu.matmul %139, %0, %cst_38 {dimension_numbers = #tpu.dot_dimension_numbers<[1], [0], [0], [1], [0, 0, 1, 1], [], []>} : vector<1x256xf32>, vector<256x512xf32>, vector<1x512xf32> -> vector<1x512xf32>
    %141 = arith.addf %140, %1 : vector<1x512xf32>
    %142 = vector.extract_strided_slice %141 {offsets = [0, 0], sizes = [1, 128], strides = [1, 1]} : vector<1x512xf32> to vector<1x128xf32>
    %143 = arith.negf %142 : vector<1x128xf32>
    %144 = math.exp %143 : vector<1x128xf32>
    %cst_39 = arith.constant 1.000000e+00 : f32
    %145 = vector.broadcast %cst_39 : f32 to vector<1x128xf32>
    %146 = arith.addf %145, %144 : vector<1x128xf32>
    %147 = arith.divf %145, %146 : vector<1x128xf32>
    %148 = vector.extract_strided_slice %141 {offsets = [0, 128], sizes = [1, 128], strides = [1, 1]} : vector<1x512xf32> to vector<1x128xf32>
    %149 = arith.negf %148 : vector<1x128xf32>
    %150 = math.exp %149 : vector<1x128xf32>
    %cst_40 = arith.constant 1.000000e+00 : f32
    %151 = vector.broadcast %cst_40 : f32 to vector<1x128xf32>
    %152 = arith.addf %151, %150 : vector<1x128xf32>
    %153 = arith.divf %151, %152 : vector<1x128xf32>
    %154 = vector.extract_strided_slice %141 {offsets = [0, 384], sizes = [1, 128], strides = [1, 1]} : vector<1x512xf32> to vector<1x128xf32>
    %155 = vector.extract_strided_slice %141 {offsets = [0, 256], sizes = [1, 128], strides = [1, 1]} : vector<1x512xf32> to vector<1x128xf32>
    %cst_41 = arith.constant 1.000000e+00 : f32
    %156 = vector.broadcast %cst_41 : f32 to vector<1x128xf32>
    %157 = arith.subf %147, %156 : vector<1x128xf32>
    %158 = arith.mulf %157, %154 : vector<1x128xf32>
    %159 = arith.addf %155, %158 : vector<1x128xf32>
    %160 = math.tanh %159 : vector<1x128xf32>
    %cst_42 = arith.constant 1.000000e+00 : f32
    %161 = vector.broadcast %cst_42 : f32 to vector<1x128xf32>
    %162 = arith.subf %161, %153 : vector<1x128xf32>
    %163 = arith.mulf %162, %160 : vector<1x128xf32>
    %164 = arith.mulf %153, %132 : vector<1x128xf32>
    %165 = arith.addf %163, %164 : vector<1x128xf32>
    %166 = arith.index_cast %c4_i32 : i32 to index
    %c0_43 = arith.constant 0 : index
    %167 = vector.load %arg9[%166, %c0_43] : memref<8x128xf32, #tpu.memory_space<vmem>>, vector<1x128xf32>
    tpu.vector_store %arg9[%166, %c0_43], %165 {strides = array<i32>} : memref<8x128xf32, #tpu.memory_space<vmem>>, vector<1x128xf32>,
    %c5_i32 = arith.constant 5 : i32
    %168 = arith.index_cast %c5_i32 : i32 to index
    %c0_44 = arith.constant 0 : index
    %169 = vector.load %arg1[%168, %c0_44] : memref<8x128xf32, #tpu.memory_space<vmem>>, vector<1x128xf32>
    %cst_45 = arith.constant 0.000000e+00 : f32
    %170 = vector.broadcast %cst_45 : f32 to vector<1x128xf32>
    %171 = arith.maximumf %169, %170 : vector<1x128xf32>
    %172 = tpu.concatenate %171, %165 in 1 : vector<1x128xf32>, vector<1x128xf32> -> vector<1x256xf32>
    %cst_46 = arith.constant dense<0.000000e+00> : vector<1x512xf32>
    %173 = tpu.matmul %172, %0, %cst_46 {dimension_numbers = #tpu.dot_dimension_numbers<[1], [0], [0], [1], [0, 0, 1, 1], [], []>} : vector<1x256xf32>, vector<256x512xf32>, vector<1x512xf32> -> vector<1x512xf32>
    %174 = arith.addf %173, %1 : vector<1x512xf32>
    %175 = vector.extract_strided_slice %174 {offsets = [0, 0], sizes = [1, 128], strides = [1, 1]} : vector<1x512xf32> to vector<1x128xf32>
    %176 = arith.negf %175 : vector<1x128xf32>
    %177 = math.exp %176 : vector<1x128xf32>
    %cst_47 = arith.constant 1.000000e+00 : f32
    %178 = vector.broadcast %cst_47 : f32 to vector<1x128xf32>
    %179 = arith.addf %178, %177 : vector<1x128xf32>
    %180 = arith.divf %178, %179 : vector<1x128xf32>
    %181 = vector.extract_strided_slice %174 {offsets = [0, 128], sizes = [1, 128], strides = [1, 1]} : vector<1x512xf32> to vector<1x128xf32>
    %182 = arith.negf %181 : vector<1x128xf32>
    %183 = math.exp %182 : vector<1x128xf32>
    %cst_48 = arith.constant 1.000000e+00 : f32
    %184 = vector.broadcast %cst_48 : f32 to vector<1x128xf32>
    %185 = arith.addf %184, %183 : vector<1x128xf32>
    %186 = arith.divf %184, %185 : vector<1x128xf32>
    %187 = vector.extract_strided_slice %174 {offsets = [0, 384], sizes = [1, 128], strides = [1, 1]} : vector<1x512xf32> to vector<1x128xf32>
    %188 = vector.extract_strided_slice %174 {offsets = [0, 256], sizes = [1, 128], strides = [1, 1]} : vector<1x512xf32> to vector<1x128xf32>
    %cst_49 = arith.constant 1.000000e+00 : f32
    %189 = vector.broadcast %cst_49 : f32 to vector<1x128xf32>
    %190 = arith.subf %180, %189 : vector<1x128xf32>
    %191 = arith.mulf %190, %187 : vector<1x128xf32>
    %192 = arith.addf %188, %191 : vector<1x128xf32>
    %193 = math.tanh %192 : vector<1x128xf32>
    %cst_50 = arith.constant 1.000000e+00 : f32
    %194 = vector.broadcast %cst_50 : f32 to vector<1x128xf32>
    %195 = arith.subf %194, %186 : vector<1x128xf32>
    %196 = arith.mulf %195, %193 : vector<1x128xf32>
    %197 = arith.mulf %186, %165 : vector<1x128xf32>
    %198 = arith.addf %196, %197 : vector<1x128xf32>
    %199 = arith.index_cast %c5_i32 : i32 to index
    %c0_51 = arith.constant 0 : index
    %200 = vector.load %arg9[%199, %c0_51] : memref<8x128xf32, #tpu.memory_space<vmem>>, vector<1x128xf32>
    tpu.vector_store %arg9[%199, %c0_51], %198 {strides = array<i32>} : memref<8x128xf32, #tpu.memory_space<vmem>>, vector<1x128xf32>,
    %c6_i32 = arith.constant 6 : i32
    %201 = arith.index_cast %c6_i32 : i32 to index
    %c0_52 = arith.constant 0 : index
    %202 = vector.load %arg1[%201, %c0_52] : memref<8x128xf32, #tpu.memory_space<vmem>>, vector<1x128xf32>
    %cst_53 = arith.constant 0.000000e+00 : f32
    %203 = vector.broadcast %cst_53 : f32 to vector<1x128xf32>
    %204 = arith.maximumf %202, %203 : vector<1x128xf32>
    %205 = tpu.concatenate %204, %198 in 1 : vector<1x128xf32>, vector<1x128xf32> -> vector<1x256xf32>
    %cst_54 = arith.constant dense<0.000000e+00> : vector<1x512xf32>
    %206 = tpu.matmul %205, %0, %cst_54 {dimension_numbers = #tpu.dot_dimension_numbers<[1], [0], [0], [1], [0, 0, 1, 1], [], []>} : vector<1x256xf32>, vector<256x512xf32>, vector<1x512xf32> -> vector<1x512xf32>
    %207 = arith.addf %206, %1 : vector<1x512xf32>
    %208 = vector.extract_strided_slice %207 {offsets = [0, 0], sizes = [1, 128], strides = [1, 1]} : vector<1x512xf32> to vector<1x128xf32>
    %209 = arith.negf %208 : vector<1x128xf32>
    %210 = math.exp %209 : vector<1x128xf32>
    %cst_55 = arith.constant 1.000000e+00 : f32
    %211 = vector.broadcast %cst_55 : f32 to vector<1x128xf32>
    %212 = arith.addf %211, %210 : vector<1x128xf32>
    %213 = arith.divf %211, %212 : vector<1x128xf32>
    %214 = vector.extract_strided_slice %207 {offsets = [0, 128], sizes = [1, 128], strides = [1, 1]} : vector<1x512xf32> to vector<1x128xf32>
    %215 = arith.negf %214 : vector<1x128xf32>
    %216 = math.exp %215 : vector<1x128xf32>
    %cst_56 = arith.constant 1.000000e+00 : f32
    %217 = vector.broadcast %cst_56 : f32 to vector<1x128xf32>
    %218 = arith.addf %217, %216 : vector<1x128xf32>
    %219 = arith.divf %217, %218 : vector<1x128xf32>
    %220 = vector.extract_strided_slice %207 {offsets = [0, 384], sizes = [1, 128], strides = [1, 1]} : vector<1x512xf32> to vector<1x128xf32>
    %221 = vector.extract_strided_slice %207 {offsets = [0, 256], sizes = [1, 128], strides = [1, 1]} : vector<1x512xf32> to vector<1x128xf32>
    %cst_57 = arith.constant 1.000000e+00 : f32
    %222 = vector.broadcast %cst_57 : f32 to vector<1x128xf32>
    %223 = arith.subf %213, %222 : vector<1x128xf32>
    %224 = arith.mulf %223, %220 : vector<1x128xf32>
    %225 = arith.addf %221, %224 : vector<1x128xf32>
    %226 = math.tanh %225 : vector<1x128xf32>
    %cst_58 = arith.constant 1.000000e+00 : f32
    %227 = vector.broadcast %cst_58 : f32 to vector<1x128xf32>
    %228 = arith.subf %227, %219 : vector<1x128xf32>
    %229 = arith.mulf %228, %226 : vector<1x128xf32>
    %230 = arith.mulf %219, %198 : vector<1x128xf32>
    %231 = arith.addf %229, %230 : vector<1x128xf32>
    %232 = arith.index_cast %c6_i32 : i32 to index
    %c0_59 = arith.constant 0 : index
    %233 = vector.load %arg9[%232, %c0_59] : memref<8x128xf32, #tpu.memory_space<vmem>>, vector<1x128xf32>
    tpu.vector_store %arg9[%232, %c0_59], %231 {strides = array<i32>} : memref<8x128xf32, #tpu.memory_space<vmem>>, vector<1x128xf32>,
    %c7_i32 = arith.constant 7 : i32
    %234 = arith.index_cast %c7_i32 : i32 to index
    %c0_60 = arith.constant 0 : index
    %235 = vector.load %arg1[%234, %c0_60] : memref<8x128xf32, #tpu.memory_space<vmem>>, vector<1x128xf32>
    %cst_61 = arith.constant 0.000000e+00 : f32
    %236 = vector.broadcast %cst_61 : f32 to vector<1x128xf32>
    %237 = arith.maximumf %235, %236 : vector<1x128xf32>
    %238 = tpu.concatenate %237, %231 in 1 : vector<1x128xf32>, vector<1x128xf32> -> vector<1x256xf32>
    %cst_62 = arith.constant dense<0.000000e+00> : vector<1x512xf32>
    %239 = tpu.matmul %238, %0, %cst_62 {dimension_numbers = #tpu.dot_dimension_numbers<[1], [0], [0], [1], [0, 0, 1, 1], [], []>} : vector<1x256xf32>, vector<256x512xf32>, vector<1x512xf32> -> vector<1x512xf32>
    %240 = arith.addf %239, %1 : vector<1x512xf32>
    %241 = vector.extract_strided_slice %240 {offsets = [0, 0], sizes = [1, 128], strides = [1, 1]} : vector<1x512xf32> to vector<1x128xf32>
    %242 = arith.negf %241 : vector<1x128xf32>
    %243 = math.exp %242 : vector<1x128xf32>
    %cst_63 = arith.constant 1.000000e+00 : f32
    %244 = vector.broadcast %cst_63 : f32 to vector<1x128xf32>
    %245 = arith.addf %244, %243 : vector<1x128xf32>
    %246 = arith.divf %244, %245 : vector<1x128xf32>
    %247 = vector.extract_strided_slice %240 {offsets = [0, 128], sizes = [1, 128], strides = [1, 1]} : vector<1x512xf32> to vector<1x128xf32>
    %248 = arith.negf %247 : vector<1x128xf32>
    %249 = math.exp %248 : vector<1x128xf32>
    %cst_64 = arith.constant 1.000000e+00 : f32
    %250 = vector.broadcast %cst_64 : f32 to vector<1x128xf32>
    %251 = arith.addf %250, %249 : vector<1x128xf32>
    %252 = arith.divf %250, %251 : vector<1x128xf32>
    %253 = vector.extract_strided_slice %240 {offsets = [0, 384], sizes = [1, 128], strides = [1, 1]} : vector<1x512xf32> to vector<1x128xf32>
    %254 = vector.extract_strided_slice %240 {offsets = [0, 256], sizes = [1, 128], strides = [1, 1]} : vector<1x512xf32> to vector<1x128xf32>
    %cst_65 = arith.constant 1.000000e+00 : f32
    %255 = vector.broadcast %cst_65 : f32 to vector<1x128xf32>
    %256 = arith.subf %246, %255 : vector<1x128xf32>
    %257 = arith.mulf %256, %253 : vector<1x128xf32>
    %258 = arith.addf %254, %257 : vector<1x128xf32>
    %259 = math.tanh %258 : vector<1x128xf32>
    %cst_66 = arith.constant 1.000000e+00 : f32
    %260 = vector.broadcast %cst_66 : f32 to vector<1x128xf32>
    %261 = arith.subf %260, %252 : vector<1x128xf32>
    %262 = arith.mulf %261, %259 : vector<1x128xf32>
    %263 = arith.mulf %252, %231 : vector<1x128xf32>
    %264 = arith.addf %262, %263 : vector<1x128xf32>
    %265 = arith.index_cast %c7_i32 : i32 to index
    %c0_67 = arith.constant 0 : index
    %266 = vector.load %arg9[%265, %c0_67] : memref<8x128xf32, #tpu.memory_space<vmem>>, vector<1x128xf32>
    tpu.vector_store %arg9[%265, %c0_67], %264 {strides = array<i32>} : memref<8x128xf32, #tpu.memory_space<vmem>>, vector<1x128xf32>,
    %c8_i32 = arith.constant 8 : i32
    %c0_68 = arith.constant 0 : index
    %c0_69 = arith.constant 0 : index
    %267 = vector.load %arg8[%c0_68, %c0_69] : memref<1x128xf32, #tpu.memory_space<vmem>>, vector<1x128xf32>
    tpu.vector_store %arg8[%c0_68, %c0_69], %264 {strides = array<i32>} : memref<1x128xf32, #tpu.memory_space<vmem>>, vector<1x128xf32>,
    %c0_70 = arith.constant 0 : index
    %c0_71 = arith.constant 0 : index
    %268 = vector.load %arg9[%c0_70, %c0_71] : memref<8x128xf32, #tpu.memory_space<vmem>>, vector<8x128xf32>
    %c0_72 = arith.constant 0 : index
    %c0_73 = arith.constant 0 : index
    %269 = vector.load %arg5[%c0_72, %c0_73] : memref<128x256xf32, #tpu.memory_space<vmem>>, vector<128x256xf32>
    %cst_74 = arith.constant dense<0.000000e+00> : vector<8x256xf32>
    %270 = tpu.matmul %268, %269, %cst_74 {dimension_numbers = #tpu.dot_dimension_numbers<[1], [0], [0], [1], [0, 0, 1, 1], [], []>} : vector<8x128xf32>, vector<128x256xf32>, vector<8x256xf32> -> vector<8x256xf32>
    %c0_75 = arith.constant 0 : index
    %c0_76 = arith.constant 0 : index
    %271 = vector.load %arg6[%c0_75, %c0_76] : memref<1x256xf32, #tpu.memory_space<vmem>>, vector<1x256xf32>
    %272 = vector.broadcast %271 : vector<1x256xf32> to vector<8x256xf32>
    %273 = arith.addf %270, %272 : vector<8x256xf32>
    %cst_77 = arith.constant dense<0xFF800000> : vector<8xf32>
    %274 = vector.multi_reduction <maximumf>, %273, %cst_77 [1] : vector<8x256xf32> to vector<8xf32>
    %275 = vector.shape_cast %274 : vector<8xf32> to vector<8x1xf32>
    %276 = vector.broadcast %275 : vector<8x1xf32> to vector<8x256xf32>
    %277 = arith.subf %273, %276 : vector<8x256xf32>
    %278 = math.exp %277 : vector<8x256xf32>
    %cst_78 = arith.constant dense<0.000000e+00> : vector<8xf32>
    %279 = vector.multi_reduction <add>, %278, %cst_78 [1] : vector<8x256xf32> to vector<8xf32>
    %280 = vector.shape_cast %279 : vector<8xf32> to vector<8x1xf32>
    %281 = math.log %280 : vector<8x1xf32>
    %282 = arith.addf %281, %275 : vector<8x1xf32>
    %283 = vector.broadcast %282 : vector<8x1xf32> to vector<8x256xf32>
    %284 = arith.subf %273, %283 : vector<8x256xf32>
    %c0_79 = arith.constant 0 : index
    %c0_80 = arith.constant 0 : index
    %285 = vector.load %arg7[%c0_79, %c0_80] : memref<8x256xf32, #tpu.memory_space<vmem>>, vector<8x256xf32>
    tpu.vector_store %arg7[%c0_79, %c0_80], %284 {strides = array<i32>} : memref<8x256xf32, #tpu.memory_space<vmem>>, vector<8x256xf32>,
    return
  }
  func.func @transform_0(%arg0: i32) -> (i32, i32) {
    %c0_i32 = arith.constant 0 : i32
    %c0_i32_0 = arith.constant 0 : i32
    %c0_i32_1 = arith.constant 0 : i32
    return %c0_i32, %c0_i32_0 : i32, i32
  }
  func.func @transform_1(%arg0: i32) -> (i32, i32) {
    %c0_i32 = arith.constant 0 : i32
    %c0_i32_0 = arith.constant 0 : i32
    %c0_i32_1 = arith.constant 0 : i32
    return %c0_i32, %c0_i32_0 : i32, i32
  }
  func.func @transform_2(%arg0: i32) -> (i32, i32) {
    %c0_i32 = arith.constant 0 : i32
    %c0_i32_0 = arith.constant 0 : i32
    %c0_i32_1 = arith.constant 0 : i32
    return %c0_i32, %c0_i32_0 : i32, i32
  }
  func.func @transform_3(%arg0: i32) -> (i32, i32) {
    %c0_i32 = arith.constant 0 : i32
    %c0_i32_0 = arith.constant 0 : i32
    %c0_i32_1 = arith.constant 0 : i32
    return %c0_i32, %c0_i32_0 : i32, i32
  }
  func.func @transform_4(%arg0: i32) -> (i32, i32) {
    %c0_i32 = arith.constant 0 : i32
    %c0_i32_0 = arith.constant 0 : i32
    %c0_i32_1 = arith.constant 0 : i32
    return %c0_i32, %c0_i32_0 : i32, i32
  }
  func.func @transform_5(%arg0: i32) -> (i32, i32) {
    %c0_i32 = arith.constant 0 : i32
    %c0_i32_0 = arith.constant 0 : i32
    %c0_i32_1 = arith.constant 0 : i32
    return %c0_i32, %c0_i32_0 : i32, i32
  }
  func.func @transform_6(%arg0: i32) -> (i32, i32) {
    %c0_i32 = arith.constant 0 : i32
    %c0_i32_0 = arith.constant 0 : i32
    %c0_i32_1 = arith.constant 0 : i32
    return %c0_i32, %c0_i32_0 : i32, i32
  }
  func.func @transform_7(%arg0: i32) -> (i32, i32) {
    %c0_i32 = arith.constant 0 : i32
    %c0_i32_0 = arith.constant 0 : i32
    %c0_i32_1 = arith.constant 0 : i32
    return %c0_i32, %c0_i32_0 : i32, i32
  }
}

</mosaic_0001>

<llo_original>
// kernel: tpu_custom_call.1
$region0: #{tpu_custom_call.1}
  #allocation0 [shape = 'u32[]', space=smem, size = 0x4, offset = 0x4, fixed_abs, tag = 'smem constant byte address 0x4 - core index']
  #allocation1 [shape = 'u32[144,128]{1,0:T(1,128)}', space=vmem, size = 0x12000, scoped, tag = 'internal scratch']
  #allocation2 [shape = 'f32[8,128]{1,0:T(8,128)}', space=vmem, size = 0x1000, scoped, tag = 'scratch operand']
  %s0 = inlined_call_operand.hbm [shape: f32[8,128], index: 0, kind: input, shape index: {}]
  %s1 = inlined_call_operand.vmem [shape: f32[1,128], index: 1, kind: input, shape index: {}]
  %s2 = inlined_call_operand.hbm [shape: f32[256,512], index: 2, kind: input, shape index: {}]
  %s3 = inlined_call_operand.vmem [shape: f32[1,512], index: 3, kind: input, shape index: {}]
  %s4 = inlined_call_operand.hbm [shape: f32[128,256], index: 4, kind: input, shape index: {}]
  %s5 = inlined_call_operand.vmem [shape: f32[1,256], index: 5, kind: input, shape index: {}]
  %s6 = inlined_call_operand.hbm [shape: f32[8,256], index: 6, kind: output, shape index: {0}]
  %s7 = inlined_call_operand.hbm [shape: f32[1,128], index: 7, kind: output, shape index: {1}]
  %8 = xla_tuple %s6, %s7
  %s9 = sld [smem:[#allocation0]]
  $region54: #{tpu_custom_call.1} parent=0
    _
  %s11 = ssub.s32 1, %s9
  %s12 = scalar_select 0, %s11, %s9
  $region1: #{tpu_custom_call.1} parent=0
    #allocation3 [shape = 'u8[4096]{0}', space=vmem, size = 0x1000, scoped, tag = 'input window, operand 0, single buffered']
    #allocation4 [shape = 's32[1]{0}', space=sflag, size = 0x4, scoped, tag = 'scoped memory for tpu_custom_call.1']
    #allocation5 [shape = 's32[1]{0}', space=sflag, size = 0x4, scoped, tag = 'scoped memory for tpu_custom_call.1']
    #allocation6 [shape = 'u8[524288]{0}', space=vmem, size = 0x80000, scoped, tag = 'input window, operand 2, single buffered']
    #allocation7 [shape = 's32[1]{0}', space=sflag, size = 0x4, scoped, tag = 'scoped memory for tpu_custom_call.1']
    #allocation8 [shape = 'u8[131072]{0}', space=vmem, size = 0x20000, scoped, tag = 'input window, operand 4, single buffered']
    #allocation9 [shape = 'u8[8192]{0}', space=vmem, size = 0x2000, scoped, tag = 'output window, operand 0, single buffered']
    #allocation10 [shape = 'u8[512]{0}', space=vmem, size = 0x400, scoped, tag = 'output window, operand 1, single buffered']
    #allocation11 [shape = 's32[1]{0}', space=sflag, size = 0x4, scoped, tag = 'scoped memory for tpu_custom_call.1']
    %13 = vsyncpa [#allocation4], 0
    %14 = vsyncpa [#allocation7], 0
    %15 = vsyncpa [#allocation5], 0
    %16 = vsyncpa [#allocation11], 0
    // Predicated region
    $region2: #{tpu_custom_call.1} parent=1 // pred_check
      _
    $region3: #{tpu_custom_call.1} parent=1 // pred_check_branch
      %18 = sbr.rel (0) target = $region5
    $region4: #{tpu_custom_call.1} parent=1 // pred_region
      %s20 = ssub.s32 128, 128
      %21 = vsyncadd [#allocation4], %s20
      %s23 = sshll.u32 [#allocation3], 4
      %s24 = int_to_ptr.vmem [resolvable:$true] %s23
      %26 = dma.hbm_to_vmem [thread:$0]  %s0, 128, %s24, [#allocation4]
    $region5: #{tpu_custom_call.1} parent=1 // pred_fallthru
      _
    // Predicated region
    $region6: #{tpu_custom_call.1} parent=1 // pred_check
      _
    $region7: #{tpu_custom_call.1} parent=1 // pred_check_branch
      %28 = sbr.rel (0) target = $region9
    $region8: #{tpu_custom_call.1} parent=1 // pred_region
      _
    $region9: #{tpu_custom_call.1} parent=1 // pred_fallthru
      _
    // Predicated region
    $region10: #{tpu_custom_call.1} parent=1 // pred_check
      _
    $region11: #{tpu_custom_call.1} parent=1 // pred_check_branch
      %30 = sbr.rel (0) target = $region13
    $region12: #{tpu_custom_call.1} parent=1 // pred_region
      %s32 = ssub.s32 16384, 16384
      %33 = vsyncadd [#allocation7], %s32
      %s34 = sshll.u32 [#allocation6], 4
      %s35 = int_to_ptr.vmem [resolvable:$true] %s34
      %40 = dma.hbm_to_vmem [thread:$0]  %s2, 16384, %s35, [#allocation7], 512, 512, 32
    $region13: #{tpu_custom_call.1} parent=1 // pred_fallthru
      _
    // Predicated region
    $region14: #{tpu_custom_call.1} parent=1 // pred_check
      _
    $region15: #{tpu_custom_call.1} parent=1 // pred_check_branch
      %42 = sbr.rel (0) target = $region17
    $region16: #{tpu_custom_call.1} parent=1 // pred_region
      _
    $region17: #{tpu_custom_call.1} parent=1 // pred_fallthru
      _
    // Predicated region
    $region18: #{tpu_custom_call.1} parent=1 // pred_check
      _
    $region19: #{tpu_custom_call.1} parent=1 // pred_check_branch
      %44 = sbr.rel (0) target = $region21
    $region20: #{tpu_custom_call.1} parent=1 // pred_region
      %s46 = ssub.s32 4096, 4096
      %47 = vsyncadd [#allocation7], %s46
      %s48 = sshll.u32 [#allocation8], 4
      %s49 = int_to_ptr.vmem [resolvable:$true] %s48
      %54 = dma.hbm_to_vmem [thread:$0]  %s4, 4096, %s49, [#allocation7], 256, 256, 16
    $region21: #{tpu_custom_call.1} parent=1 // pred_fallthru
      _
    // Predicated region
    $region22: #{tpu_custom_call.1} parent=1 // pred_check
      _
    $region23: #{tpu_custom_call.1} parent=1 // pred_check_branch
      %56 = sbr.rel (0) target = $region25
    $region24: #{tpu_custom_call.1} parent=1 // pred_region
      _
    $region25: #{tpu_custom_call.1} parent=1 // pred_fallthru
      _
    // Predicated region
    $region26: #{tpu_custom_call.1} parent=1 // pred_check
      _
    $region27: #{tpu_custom_call.1} parent=1 // pred_check_branch
      %58 = sbr.rel (0) target = $region29
    $region28: #{tpu_custom_call.1} parent=1 // pred_region
      %59 = dma.done [#allocation4], 128
    $region29: #{tpu_custom_call.1} parent=1 // pred_fallthru
      _
    // Predicated region
    $region30: #{tpu_custom_call.1} parent=1 // pred_check
      _
    $region31: #{tpu_custom_call.1} parent=1 // pred_check_branch
      %61 = sbr.rel (0) target = $region33
    $region32: #{tpu_custom_call.1} parent=1 // pred_region
      %62 = dma.done [#allocation7], 16384
    $region33: #{tpu_custom_call.1} parent=1 // pred_fallthru
      _
    // Predicated region
    $region34: #{tpu_custom_call.1} parent=1 // pred_check
      _
    $region35: #{tpu_custom_call.1} parent=1 // pred_check_branch
      %64 = sbr.rel (0) target = $region37
    $region36: #{tpu_custom_call.1} parent=1 // pred_region
      %65 = dma.done [#allocation7], 4096
    $region37: #{tpu_custom_call.1} parent=1 // pred_fallthru
      _
    %v66 = vld [vmem:[#allocation6] sm:$0xff]
    %v67 = vld [vmem:[#allocation6 + $0x8] sm:$0xff]
    %v68 = vld [vmem:[#allocation6 + $0x10] sm:$0xff]
    %v69 = vld [vmem:[#allocation6 + $0x18] sm:$0xff]
    %v70 = vld [vmem:[#allocation6 + $0x20] sm:$0xff]
    %v71 = vld [vmem:[#allocation6 + $0x28] sm:$0xff]
    %v72 = vld [vmem:[#allocation6 + $0x30] sm:$0xff]
    %v73 = vld [vmem:[#allocation6 + $0x38] sm:$0xff]
    %v74 = vld [vmem:[#allocation6 + $0x40] sm:$0xff]
    %v75 = vld [vmem:[#allocation6 + $0x48] sm:$0xff]
    %v76 = vld [vmem:[#allocation6 + $0x50] sm:$0xff]
    %v77 = vld [vmem:[#allocation6 + $0x58] sm:$0xff]
    %v78 = vld [vmem:[#allocation6 + $0x60] sm:$0xff]
    %v79 = vld [vmem:[#allocation6 + $0x68] sm:$0xff]
    %v80 = vld [vmem:[#allocation6 + $0x70] sm:$0xff]
    %v81 = vld [vmem:[#allocation6 + $0x78] sm:$0xff]
    %v82 = vld [vmem:[#allocation6 + $0x80] sm:$0xff]
    %v83 = vld [vmem:[#allocation6 + $0x88] sm:$0xff]
    %v84 = vld [vmem:[#allocation6 + $0x90] sm:$0xff]
    %v85 = vld [vmem:[#allocation6 + $0x98] sm:$0xff]
    %v86 = vld [vmem:[#allocation6 + $0xa0] sm:$0xff]
    %v87 = vld [vmem:[#allocation6 + $0xa8] sm:$0xff]
    %v88 = vld [vmem:[#allocation6 + $0xb0] sm:$0xff]
    %v89 = vld [vmem:[#allocation6 + $0xb8] sm:$0xff]
    %v90 = vld [vmem:[#allocation6 + $0xc0] sm:$0xff]
    %v91 = vld [vmem:[#allocation6 + $0xc8] sm:$0xff]
    %v92 = vld [vmem:[#allocation6 + $0xd0] sm:$0xff]
    %v93 = vld [vmem:[#allocation6 + $0xd8] sm:$0xff]
    %v94 = vld [vmem:[#allocation6 + $0xe0] sm:$0xff]
    %v95 = vld [vmem:[#allocation6 + $0xe8] sm:$0xff]
    %v96 = vld [vmem:[#allocation6 + $0xf0] sm:$0xff]
    %v97 = vld [vmem:[#allocation6 + $0xf8] sm:$0xff]
    %v98 = vld [vmem:[#allocation6 + $0x100] sm:$0xff]
    %v99 = vld [vmem:[#allocation6 + $0x108] sm:$0xff]
    %v100 = vld [vmem:[#allocation6 + $0x110] sm:$0xff]
    %v101 = vld [vmem:[#allocation6 + $0x118] sm:$0xff]
    %v102 = vld [vmem:[#allocation6 + $0x120] sm:$0xff]
    %v103 = vld [vmem:[#allocation6 + $0x128] sm:$0xff]
    %v104 = vld [vmem:[#allocation6 + $0x130] sm:$0xff]
    %v105 = vld [vmem:[#allocation6 + $0x138] sm:$0xff]
    %v106 = vld [vmem:[#allocation6 + $0x140] sm:$0xff]
    %v107 = vld [vmem:[#allocation6 + $0x148] sm:$0xff]
    %v108 = vld [vmem:[#allocation6 + $0x150] sm:$0xff]
    %v109 = vld [vmem:[#allocation6 + $0x158] sm:$0xff]
    %v110 = vld [vmem:[#allocation6 + $0x160] sm:$0xff]
    %v111 = vld [vmem:[#allocation6 + $0x168] sm:$0xff]
    %v112 = vld [vmem:[#allocation6 + $0x170] sm:$0xff]
    %v113 = vld [vmem:[#allocation6 + $0x178] sm:$0xff]
    %v114 = vld [vmem:[#allocation6 + $0x180] sm:$0xff]
    %v115 = vld [vmem:[#allocation6 + $0x188] sm:$0xff]
    %v116 = vld [vmem:[#allocation6 + $0x190] sm:$0xff]
    %v117 = vld [vmem:[#allocation6 + $0x198] sm:$0xff]
    %v118 = vld [vmem:[#allocation6 + $0x1a0] sm:$0xff]
    %v119 = vld [vmem:[#allocation6 + $0x1a8] sm:$0xff]
    %v120 = vld [vmem:[#allocation6 + $0x1b0] sm:$0xff]
    %v121 = vld [vmem:[#allocation6 + $0x1b8] sm:$0xff]
    %v122 = vld [vmem:[#allocation6 + $0x1c0] sm:$0xff]
    %v123 = vld [vmem:[#allocation6 + $0x1c8] sm:$0xff]
    %v124 = vld [vmem:[#allocation6 + $0x1d0] sm:$0xff]
    %v125 = vld [vmem:[#allocation6 + $0x1d8] sm:$0xff]
    %v126 = vld [vmem:[#allocation6 + $0x1e0] sm:$0xff]
    %v127 = vld [vmem:[#allocation6 + $0x1e8] sm:$0xff]
    %v128 = vld [vmem:[#allocation6 + $0x1f0] sm:$0xff]
    %v129 = vld [vmem:[#allocation6 + $0x1f8] sm:$0xff]
    %v130 = vld [vmem:[#allocation6 + $0x200] sm:$0xff]
    %v131 = vld [vmem:[#allocation6 + $0x208] sm:$0xff]
    %v132 = vld [vmem:[#allocation6 + $0x210] sm:$0xff]
    %v133 = vld [vmem:[#allocation6 + $0x218] sm:$0xff]
    %v134 = vld [vmem:[#allocation6 + $0x220] sm:$0xff]
    %v135 = vld [vmem:[#allocation6 + $0x228] sm:$0xff]
    %v136 = vld [vmem:[#allocation6 + $0x230] sm:$0xff]
    %v137 = vld [vmem:[#allocation6 + $0x238] sm:$0xff]
    %v138 = vld [vmem:[#allocation6 + $0x240] sm:$0xff]
    %v139 = vld [vmem:[#allocation6 + $0x248] sm:$0xff]
    %v140 = vld [vmem:[#allocation6 + $0x250] sm:$0xff]
    %v141 = vld [vmem:[#allocation6 + $0x258] sm:$0xff]
    %v142 = vld [vmem:[#allocation6 + $0x260] sm:$0xff]
    %v143 = vld [vmem:[#allocation6 + $0x268] sm:$0xff]
    %v144 = vld [vmem:[#allocation6 + $0x270] sm:$0xff]
    %v145 = vld [vmem:[#allocation6 + $0x278] sm:$0xff]
    %v146 = vld [vmem:[#allocation6 + $0x280] sm:$0xff]
    %v147 = vld [vmem:[#allocation6 + $0x288] sm:$0xff]
    %v148 = vld [vmem:[#allocation6 + $0x290] sm:$0xff]
    %v149 = vld [vmem:[#allocation6 + $0x298] sm:$0xff]
    %v150 = vld [vmem:[#allocation6 + $0x2a0] sm:$0xff]
    %v151 = vld [vmem:[#allocation6 + $0x2a8] sm:$0xff]
    %v152 = vld [vmem:[#allocation6 + $0x2b0] sm:$0xff]
    %v153 = vld [vmem:[#allocation6 + $0x2b8] sm:$0xff]
    %v154 = vld [vmem:[#allocation6 + $0x2c0] sm:$0xff]
    %v155 = vld [vmem:[#allocation6 + $0x2c8] sm:$0xff]
    %v156 = vld [vmem:[#allocation6 + $0x2d0] sm:$0xff]
    %v157 = vld [vmem:[#allocation6 + $0x2d8] sm:$0xff]
    %v158 = vld [vmem:[#allocation6 + $0x2e0] sm:$0xff]
    %v159 = vld [vmem:[#allocation6 + $0x2e8] sm:$0xff]
    %v160 = vld [vmem:[#allocation6 + $0x2f0] sm:$0xff]
    %v161 = vld [vmem:[#allocation6 + $0x2f8] sm:$0xff]
    %v162 = vld [vmem:[#allocation6 + $0x300] sm:$0xff]
    %v163 = vld [vmem:[#allocation6 + $0x308] sm:$0xff]
    %v164 = vld [vmem:[#allocation6 + $0x310] sm:$0xff]
    %v165 = vld [vmem:[#allocation6 + $0x318] sm:$0xff]
    %v166 = vld [vmem:[#allocation6 + $0x320] sm:$0xff]
    %v167 = vld [vmem:[#allocation6 + $0x328] sm:$0xff]
    %v168 = vld [vmem:[#allocation6 + $0x330] sm:$0xff]
    %v169 = vld [vmem:[#allocation6 + $0x338] sm:$0xff]
    %v170 = vld [vmem:[#allocation6 + $0x340] sm:$0xff]
    %v171 = vld [vmem:[#allocation6 + $0x348] sm:$0xff]
    %v172 = vld [vmem:[#allocation6 + $0x350] sm:$0xff]
    %v173 = vld [vmem:[#allocation6 + $0x358] sm:$0xff]
    %v174 = vld [vmem:[#allocation6 + $0x360] sm:$0xff]
    %v175 = vld [vmem:[#allocation6 + $0x368] sm:$0xff]
    %v176 = vld [vmem:[#allocation6 + $0x370] sm:$0xff]
    %v177 = vld [vmem:[#allocation6 + $0x378] sm:$0xff]
    %v178 = vld [vmem:[#allocation6 + $0x380] sm:$0xff]
    %v179 = vld [vmem:[#allocation6 + $0x388] sm:$0xff]
    %v180 = vld [vmem:[#allocation6 + $0x390] sm:$0xff]
    %v181 = vld [vmem:[#allocation6 + $0x398] sm:$0xff]
    %v182 = vld [vmem:[#allocation6 + $0x3a0] sm:$0xff]
    %v183 = vld [vmem:[#allocation6 + $0x3a8] sm:$0xff]
    %v184 = vld [vmem:[#allocation6 + $0x3b0] sm:$0xff]
    %v185 = vld [vmem:[#allocation6 + $0x3b8] sm:$0xff]
    %v186 = vld [vmem:[#allocation6 + $0x3c0] sm:$0xff]
    %v187 = vld [vmem:[#allocation6 + $0x3c8] sm:$0xff]
    %v188 = vld [vmem:[#allocation6 + $0x3d0] sm:$0xff]
    %v189 = vld [vmem:[#allocation6 + $0x3d8] sm:$0xff]
    %v190 = vld [vmem:[#allocation6 + $0x3e0] sm:$0xff]
    %v191 = vld [vmem:[#allocation6 + $0x3e8] sm:$0xff]
    %v192 = vld [vmem:[#allocation6 + $0x3f0] sm:$0xff]
    %v193 = vld [vmem:[#allocation6 + $0x3f8] sm:$0xff]
    %v194 = vld [vmem:[%s3] sm:$0xf]
    %v195 = vld [vmem:[%s1] sm:$0x1]
    %v196 = vld [vmem:[#allocation3] sm:$0x1]
    %v197 = vmax.f32 %v196, 0.0
    %v199 = vlaneseq
    %v200 = vshrl.u32 %v199, 7
    %v201 = vsub.s32 0, %v200
    %v202 = vrot.slane %v194, %v201
    %v203 = vlaneseq
    %v204 = vshrl.u32 %v203, 7
    %v205 = vsub.s32 1, %v204
    %v206 = vrot.slane %v194, %v205
    %v207 = vlaneseq
    %v208 = vshrl.u32 %v207, 7
    %v209 = vsub.s32 2, %v208
    %v210 = vrot.slane %v194, %v209
    %v211 = vlaneseq
    %v212 = vshrl.u32 %v211, 7
    %v213 = vsub.s32 3, %v212
    %v214 = vrot.slane %v194, %v213
    %219 = vmatprep.subr.mxu0 %v67
    %220 = vmatpush1.msra.mxu0 %v66
    %221 = vmatprep.subr.mxu0 %v71
    %222 = vmatpush1.msra.mxu0 %v70
    %223 = vmatprep.subr.mxu0 %v75
    %224 = vmatpush1.msra.mxu0 %v74
    %225 = vmatprep.subr.mxu0 %v79
    %226 = vmatpush1.msra.mxu0 %v78
    %227 = vmatprep.subr.mxu0 %v83
    %228 = vmatpush1.msra.mxu0 %v82
    %229 = vmatprep.subr.mxu0 %v87
    %230 = vmatpush1.msra.mxu0 %v86
    %231 = vmatprep.subr.mxu0 %v91
    %232 = vmatpush1.msra.mxu0 %v90
    %233 = vmatprep.subr.mxu0 %v95
    %234 = vmatpush1.msra.mxu0 %v94
    %235 = vmatprep.subr.mxu0 %v99
    %236 = vmatpush1.msra.mxu0 %v98
    %237 = vmatprep.subr.mxu0 %v103
    %238 = vmatpush1.msra.mxu0 %v102
    %239 = vmatprep.subr.mxu0 %v107
    %240 = vmatpush1.msra.mxu0 %v106
    %241 = vmatprep.subr.mxu0 %v111
    %242 = vmatpush1.msra.mxu0 %v110
    %243 = vmatprep.subr.mxu0 %v115
    %244 = vmatpush1.msra.mxu0 %v114
    %245 = vmatprep.subr.mxu0 %v119
    %246 = vmatpush1.msra.mxu0 %v118
    %247 = vmatprep.subr.mxu0 %v123
    %248 = vmatpush1.msra.mxu0 %v122
    %249 = vmatprep.subr.mxu0 %v127
    %250 = vmatpush1.msra.mxu0 %v126
    %251 = vmatprep.subr.mxu0 %v131
    %252 = vmatpush1.msra.mxu0 %v130
    %253 = vmatprep.subr.mxu0 %v135
    %254 = vmatpush1.msra.mxu0 %v134
    %255 = vmatprep.subr.mxu0 %v139
    %256 = vmatpush1.msra.mxu0 %v138
    %257 = vmatprep.subr.mxu0 %v143
    %258 = vmatpush1.msra.mxu0 %v142
    %259 = vmatprep.subr.mxu0 %v147
    %260 = vmatpush1.msra.mxu0 %v146
    %261 = vmatprep.subr.mxu0 %v151
    %262 = vmatpush1.msra.mxu0 %v150
    %263 = vmatprep.subr.mxu0 %v155
    %264 = vmatpush1.msra.mxu0 %v154
    %265 = vmatprep.subr.mxu0 %v159
    %266 = vmatpush1.msra.mxu0 %v158
    %267 = vmatprep.subr.mxu0 %v163
    %268 = vmatpush1.msra.mxu0 %v162
    %269 = vmatprep.subr.mxu0 %v167
    %270 = vmatpush1.msra.mxu0 %v166
    %271 = vmatprep.subr.mxu0 %v171
    %272 = vmatpush1.msra.mxu0 %v170
    %273 = vmatprep.subr.mxu0 %v175
    %274 = vmatpush1.msra.mxu0 %v174
    %275 = vmatprep.subr.mxu0 %v179
    %276 = vmatpush1.msra.mxu0 %v178
    %277 = vmatprep.subr.mxu0 %v183
    %278 = vmatpush1.msra.mxu0 %v182
    %279 = vmatprep.subr.mxu0 %v187
    %280 = vmatpush1.msra.mxu0 %v186
    %281 = vmatprep.subr.mxu0 %v191
    %282 = vmatpush1.msra.mxu0 %v190
    %283 = vmatprep.mubr.f32.mxu0 %v195
    %284 = vmatmul.mubr.f32.gmra.mrb[0].mxu0 %v197
    %v285 = vpop.f32.mrb[0].mxu0
    %v286 = vadd.f32 %v202, %v285
    %v287 = vpop.f32.mrb[0].mxu0
    %v288 = vadd.f32 %v206, %v287
    %289 = vdwg.mxu0
    %290 = vmatprep.subr.mxu0 %v69
    %291 = vmatpush1.msra.mxu0 %v68
    %292 = vmatprep.subr.mxu0 %v73
    %293 = vmatpush1.msra.mxu0 %v72
    %294 = vmatprep.subr.mxu0 %v77
    %295 = vmatpush1.msra.mxu0 %v76
    %296 = vmatprep.subr.mxu0 %v81
    %297 = vmatpush1.msra.mxu0 %v80
    %298 = vmatprep.subr.mxu0 %v85
    %299 = vmatpush1.msra.mxu0 %v84
    %300 = vmatprep.subr.mxu0 %v89
    %301 = vmatpush1.msra.mxu0 %v88
    %302 = vmatprep.subr.mxu0 %v93
    %303 = vmatpush1.msra.mxu0 %v92
    %304 = vmatprep.subr.mxu0 %v97
    %305 = vmatpush1.msra.mxu0 %v96
    %306 = vmatprep.subr.mxu0 %v101
    %307 = vmatpush1.msra.mxu0 %v100
    %308 = vmatprep.subr.mxu0 %v105
    %309 = vmatpush1.msra.mxu0 %v104
    %310 = vmatprep.subr.mxu0 %v109
    %311 = vmatpush1.msra.mxu0 %v108
    %312 = vmatprep.subr.mxu0 %v113
    %313 = vmatpush1.msra.mxu0 %v112
    %314 = vmatprep.subr.mxu0 %v117
    %315 = vmatpush1.msra.mxu0 %v116
    %316 = vmatprep.subr.mxu0 %v121
    %317 = vmatpush1.msra.mxu0 %v120
    %318 = vmatprep.subr.mxu0 %v125
    %319 = vmatpush1.msra.mxu0 %v124
    %320 = vmatprep.subr.mxu0 %v129
    %321 = vmatpush1.msra.mxu0 %v128
    %322 = vmatprep.subr.mxu0 %v133
    %323 = vmatpush1.msra.mxu0 %v132
    %324 = vmatprep.subr.mxu0 %v137
    %325 = vmatpush1.msra.mxu0 %v136
    %326 = vmatprep.subr.mxu0 %v141
    %327 = vmatpush1.msra.mxu0 %v140
    %328 = vmatprep.subr.mxu0 %v145
    %329 = vmatpush1.msra.mxu0 %v144
    %330 = vmatprep.subr.mxu0 %v149
    %331 = vmatpush1.msra.mxu0 %v148
    %332 = vmatprep.subr.mxu0 %v153
    %333 = vmatpush1.msra.mxu0 %v152
    %334 = vmatprep.subr.mxu0 %v157
    %335 = vmatpush1.msra.mxu0 %v156
    %336 = vmatprep.subr.mxu0 %v161
    %337 = vmatpush1.msra.mxu0 %v160
    %338 = vmatprep.subr.mxu0 %v165
    %339 = vmatpush1.msra.mxu0 %v164
    %340 = vmatprep.subr.mxu0 %v169
    %341 = vmatpush1.msra.mxu0 %v168
    %342 = vmatprep.subr.mxu0 %v173
    %343 = vmatpush1.msra.mxu0 %v172
    %344 = vmatprep.subr.mxu0 %v177
    %345 = vmatpush1.msra.mxu0 %v176
    %346 = vmatprep.subr.mxu0 %v181
    %347 = vmatpush1.msra.mxu0 %v180
    %348 = vmatprep.subr.mxu0 %v185
    %349 = vmatpush1.msra.mxu0 %v184
    %350 = vmatprep.subr.mxu0 %v189
    %351 = vmatpush1.msra.mxu0 %v188
    %352 = vmatprep.subr.mxu0 %v193
    %353 = vmatpush1.msra.mxu0 %v192
    %354 = vmatprep.mubr.f32.mxu0 %v195
    %355 = vmatmul.mubr.f32.gmra.mrb[0].mxu0 %v197
    %v356 = vpop.f32.mrb[0].mxu0
    %v357 = vadd.f32 %v210, %v356
    %v358 = vpop.f32.mrb[0].mxu0
    %v359 = vadd.f32 %v214, %v358
    %360 = vdwg.mxu0
    %v361 = vxor.u32 %v286, 2147483648
    %v362 = vmul.f32 %v361, 1.442695
    %v363 = vpow.pop %v362
    %v364 = vadd.f32 %v363, 1.0
    %v365 = vrcp.pop %v364
    %v366 = vmul.f32 1.0, %v365
    %v367 = vxor.u32 %v288, 2147483648
    %v368 = vmul.f32 %v367, 1.442695
    %v369 = vpow.pop %v368
    %v370 = vadd.f32 %v369, 1.0
    %v371 = vrcp.pop %v370
    %v372 = vmul.f32 1.0, %v371
    %v373 = vsub.f32 %v366, 1.0
    %v374 = vmul.f32 %v373, %v359
    %v375 = vadd.f32 %v357, %v374
    %v376 = vtanh.pop %v375
    %v377 = vsub.f32 1.0, %v372
    %v378 = vmul.f32 %v377, %v376
    %v379 = vmul.f32 %v372, %v195
    %v380 = vadd.f32 %v378, %v379
    %381 = vst [vmem:[#allocation2] sm:$0x1] %v380
    %v382 = vld [vmem:[#allocation3 + $0x1] sm:$0x1]
    %v383 = vmax.f32 %v382, 0.0
    %384 = vmatprep.subr.mxu0 %v67
    %385 = vmatpush1.msra.mxu0 %v66
    %386 = vmatprep.subr.mxu0 %v71
    %387 = vmatpush1.msra.mxu0 %v70
    %388 = vmatprep.subr.mxu0 %v75
    %389 = vmatpush1.msra.mxu0 %v74
    %390 = vmatprep.subr.mxu0 %v79
    %391 = vmatpush1.msra.mxu0 %v78
    %392 = vmatprep.subr.mxu0 %v83
    %393 = vmatpush1.msra.mxu0 %v82
    %394 = vmatprep.subr.mxu0 %v87
    %395 = vmatpush1.msra.mxu0 %v86
    %396 = vmatprep.subr.mxu0 %v91
    %397 = vmatpush1.msra.mxu0 %v90
    %398 = vmatprep.subr.mxu0 %v95
    %399 = vmatpush1.msra.mxu0 %v94
    %400 = vmatprep.subr.mxu0 %v99
    %401 = vmatpush1.msra.mxu0 %v98
    %402 = vmatprep.subr.mxu0 %v103
    %403 = vmatpush1.msra.mxu0 %v102
    %404 = vmatprep.subr.mxu0 %v107
    %405 = vmatpush1.msra.mxu0 %v106
    %406 = vmatprep.subr.mxu0 %v111
    %407 = vmatpush1.msra.mxu0 %v110
    %408 = vmatprep.subr.mxu0 %v115
    %409 = vmatpush1.msra.mxu0 %v114
    %410 = vmatprep.subr.mxu0 %v119
    %411 = vmatpush1.msra.mxu0 %v118
    %412 = vmatprep.subr.mxu0 %v123
    %413 = vmatpush1.msra.mxu0 %v122
    %414 = vmatprep.subr.mxu0 %v127
    %415 = vmatpush1.msra.mxu0 %v126
    %416 = vmatprep.subr.mxu0 %v131
    %417 = vmatpush1.msra.mxu0 %v130
    %418 = vmatprep.subr.mxu0 %v135
    %419 = vmatpush1.msra.mxu0 %v134
    %420 = vmatprep.subr.mxu0 %v139
    %421 = vmatpush1.msra.mxu0 %v138
    %422 = vmatprep.subr.mxu0 %v143
    %423 = vmatpush1.msra.mxu0 %v142
    %424 = vmatprep.subr.mxu0 %v147
    %425 = vmatpush1.msra.mxu0 %v146
    %426 = vmatprep.subr.mxu0 %v151
    %427 = vmatpush1.msra.mxu0 %v150
    %428 = vmatprep.subr.mxu0 %v155
    %429 = vmatpush1.msra.mxu0 %v154
    %430 = vmatprep.subr.mxu0 %v159
    %431 = vmatpush1.msra.mxu0 %v158
    %432 = vmatprep.subr.mxu0 %v163
    %433 = vmatpush1.msra.mxu0 %v162
    %434 = vmatprep.subr.mxu0 %v167
    %435 = vmatpush1.msra.mxu0 %v166
    %436 = vmatprep.subr.mxu0 %v171
    %437 = vmatpush1.msra.mxu0 %v170
    %438 = vmatprep.subr.mxu0 %v175
    %439 = vmatpush1.msra.mxu0 %v174
    %440 = vmatprep.subr.mxu0 %v179
    %441 = vmatpush1.msra.mxu0 %v178
    %442 = vmatprep.subr.mxu0 %v183
    %443 = vmatpush1.msra.mxu0 %v182
    %444 = vmatprep.subr.mxu0 %v187
    %445 = vmatpush1.msra.mxu0 %v186
    %446 = vmatprep.subr.mxu0 %v191
    %447 = vmatpush1.msra.mxu0 %v190
    %448 = vmatprep.mubr.f32.mxu0 %v380
    %449 = vmatmul.mubr.f32.gmra.mrb[0].mxu0 %v383
    %v450 = vpop.f32.mrb[0].mxu0
    %v451 = vadd.f32 %v202, %v450
    %v452 = vpop.f32.mrb[0].mxu0
    %v453 = vadd.f32 %v206, %v452
    %454 = vdwg.mxu0
    %455 = vmatprep.subr.mxu0 %v69
    %456 = vmatpush1.msra.mxu0 %v68
    %457 = vmatprep.subr.mxu0 %v73
    %458 = vmatpush1.msra.mxu0 %v72
    %459 = vmatprep.subr.mxu0 %v77
    %460 = vmatpush1.msra.mxu0 %v76
    %461 = vmatprep.subr.mxu0 %v81
    %462 = vmatpush1.msra.mxu0 %v80
    %463 = vmatprep.subr.mxu0 %v85
    %464 = vmatpush1.msra.mxu0 %v84
    %465 = vmatprep.subr.mxu0 %v89
    %466 = vmatpush1.msra.mxu0 %v88
    %467 = vmatprep.subr.mxu0 %v93
    %468 = vmatpush1.msra.mxu0 %v92
    %469 = vmatprep.subr.mxu0 %v97
    %470 = vmatpush1.msra.mxu0 %v96
    %471 = vmatprep.subr.mxu0 %v101
    %472 = vmatpush1.msra.mxu0 %v100
    %473 = vmatprep.subr.mxu0 %v105
    %474 = vmatpush1.msra.mxu0 %v104
    %475 = vmatprep.subr.mxu0 %v109
    %476 = vmatpush1.msra.mxu0 %v108
    %477 = vmatprep.subr.mxu0 %v113
    %478 = vmatpush1.msra.mxu0 %v112
    %479 = vmatprep.subr.mxu0 %v117
    %480 = vmatpush1.msra.mxu0 %v116
    %481 = vmatprep.subr.mxu0 %v121
    %482 = vmatpush1.msra.mxu0 %v120
    %483 = vmatprep.subr.mxu0 %v125
    %484 = vmatpush1.msra.mxu0 %v124
    %485 = vmatprep.subr.mxu0 %v129
    %486 = vmatpush1.msra.mxu0 %v128
    %487 = vmatprep.subr.mxu0 %v133
    %488 = vmatpush1.msra.mxu0 %v132
    %489 = vmatprep.subr.mxu0 %v137
    %490 = vmatpush1.msra.mxu0 %v136
    %491 = vmatprep.subr.mxu0 %v141
    %492 = vmatpush1.msra.mxu0 %v140
    %493 = vmatprep.subr.mxu0 %v145
    %494 = vmatpush1.msra.mxu0 %v144
    %495 = vmatprep.subr.mxu0 %v149
    %496 = vmatpush1.msra.mxu0 %v148
    %497 = vmatprep.subr.mxu0 %v153
    %498 = vmatpush1.msra.mxu0 %v152
    %499 = vmatprep.subr.mxu0 %v157
    %500 = vmatpush1.msra.mxu0 %v156
    %501 = vmatprep.subr.mxu0 %v161
    %502 = vmatpush1.msra.mxu0 %v160
    %503 = vmatprep.subr.mxu0 %v165
    %504 = vmatpush1.msra.mxu0 %v164
    %505 = vmatprep.subr.mxu0 %v169
    %506 = vmatpush1.msra.mxu0 %v168
    %507 = vmatprep.subr.mxu0 %v173
    %508 = vmatpush1.msra.mxu0 %v172
    %509 = vmatprep.subr.mxu0 %v177
    %510 = vmatpush1.msra.mxu0 %v176
    %511 = vmatprep.subr.mxu0 %v181
    %512 = vmatpush1.msra.mxu0 %v180
    %513 = vmatprep.subr.mxu0 %v185
    %514 = vmatpush1.msra.mxu0 %v184
    %515 = vmatprep.subr.mxu0 %v189
    %516 = vmatpush1.msra.mxu0 %v188
    %517 = vmatprep.subr.mxu0 %v193
    %518 = vmatpush1.msra.mxu0 %v192
    %519 = vmatprep.mubr.f32.mxu0 %v380
    %520 = vmatmul.mubr.f32.gmra.mrb[0].mxu0 %v383
    %v521 = vpop.f32.mrb[0].mxu0
    %v522 = vadd.f32 %v210, %v521
    %v523 = vpop.f32.mrb[0].mxu0
    %v524 = vadd.f32 %v214, %v523
    %525 = vdwg.mxu0
    %v526 = vxor.u32 %v451, 2147483648
    %v527 = vmul.f32 %v526, 1.442695
    %v528 = vpow.pop %v527
    %v529 = vadd.f32 %v528, 1.0
    %v530 = vrcp.pop %v529
    %v531 = vmul.f32 1.0, %v530
    %v532 = vxor.u32 %v453, 2147483648
    %v533 = vmul.f32 %v532, 1.442695
    %v534 = vpow.pop %v533
    %v535 = vadd.f32 %v534, 1.0
    %v536 = vrcp.pop %v535
    %v537 = vmul.f32 1.0, %v536
    %v538 = vsub.f32 %v531, 1.0
    %v539 = vmul.f32 %v538, %v524
    %v540 = vadd.f32 %v522, %v539
    %v541 = vtanh.pop %v540
    %v542 = vsub.f32 1.0, %v537
    %v543 = vmul.f32 %v542, %v541
    %v544 = vmul.f32 %v537, %v380
    %v545 = vadd.f32 %v543, %v544
    %546 = vst [vmem:[#allocation2 + $0x1] sm:$0x1] %v545
    %v547 = vld [vmem:[#allocation3 + $0x2] sm:$0x1]
    %v548 = vmax.f32 %v547, 0.0
    %549 = vmatprep.subr.mxu0 %v67
    %550 = vmatpush1.msra.mxu0 %v66
    %551 = vmatprep.subr.mxu0 %v71
    %552 = vmatpush1.msra.mxu0 %v70
    %553 = vmatprep.subr.mxu0 %v75
    %554 = vmatpush1.msra.mxu0 %v74
    %555 = vmatprep.subr.mxu0 %v79
    %556 = vmatpush1.msra.mxu0 %v78
    %557 = vmatprep.subr.mxu0 %v83
    %558 = vmatpush1.msra.mxu0 %v82
    %559 = vmatprep.subr.mxu0 %v87
    %560 = vmatpush1.msra.mxu0 %v86
    %561 = vmatprep.subr.mxu0 %v91
    %562 = vmatpush1.msra.mxu0 %v90
    %563 = vmatprep.subr.mxu0 %v95
    %564 = vmatpush1.msra.mxu0 %v94
    %565 = vmatprep.subr.mxu0 %v99
    %566 = vmatpush1.msra.mxu0 %v98
    %567 = vmatprep.subr.mxu0 %v103
    %568 = vmatpush1.msra.mxu0 %v102
    %569 = vmatprep.subr.mxu0 %v107
    %570 = vmatpush1.msra.mxu0 %v106
    %571 = vmatprep.subr.mxu0 %v111
    %572 = vmatpush1.msra.mxu0 %v110
    %573 = vmatprep.subr.mxu0 %v115
    %574 = vmatpush1.msra.mxu0 %v114
    %575 = vmatprep.subr.mxu0 %v119
    %576 = vmatpush1.msra.mxu0 %v118
    %577 = vmatprep.subr.mxu0 %v123
    %578 = vmatpush1.msra.mxu0 %v122
    %579 = vmatprep.subr.mxu0 %v127
    %580 = vmatpush1.msra.mxu0 %v126
    %581 = vmatprep.subr.mxu0 %v131
    %582 = vmatpush1.msra.mxu0 %v130
    %583 = vmatprep.subr.mxu0 %v135
    %584 = vmatpush1.msra.mxu0 %v134
    %585 = vmatprep.subr.mxu0 %v139
    %586 = vmatpush1.msra.mxu0 %v138
    %587 = vmatprep.subr.mxu0 %v143
    %588 = vmatpush1.msra.mxu0 %v142
    %589 = vmatprep.subr.mxu0 %v147
    %590 = vmatpush1.msra.mxu0 %v146
    %591 = vmatprep.subr.mxu0 %v151
    %592 = vmatpush1.msra.mxu0 %v150
    %593 = vmatprep.subr.mxu0 %v155
    %594 = vmatpush1.msra.mxu0 %v154
    %595 = vmatprep.subr.mxu0 %v159
    %596 = vmatpush1.msra.mxu0 %v158
    %597 = vmatprep.subr.mxu0 %v163
    %598 = vmatpush1.msra.mxu0 %v162
    %599 = vmatprep.subr.mxu0 %v167
    %600 = vmatpush1.msra.mxu0 %v166
    %601 = vmatprep.subr.mxu0 %v171
    %602 = vmatpush1.msra.mxu0 %v170
    %603 = vmatprep.subr.mxu0 %v175
    %604 = vmatpush1.msra.mxu0 %v174
    %605 = vmatprep.subr.mxu0 %v179
    %606 = vmatpush1.msra.mxu0 %v178
    %607 = vmatprep.subr.mxu0 %v183
    %608 = vmatpush1.msra.mxu0 %v182
    %609 = vmatprep.subr.mxu0 %v187
    %610 = vmatpush1.msra.mxu0 %v186
    %611 = vmatprep.subr.mxu0 %v191
    %612 = vmatpush1.msra.mxu0 %v190
    %613 = vmatprep.mubr.f32.mxu0 %v545
    %614 = vmatmul.mubr.f32.gmra.mrb[0].mxu0 %v548
    %v615 = vpop.f32.mrb[0].mxu0
    %v616 = vadd.f32 %v202, %v615
    %v617 = vpop.f32.mrb[0].mxu0
    %v618 = vadd.f32 %v206, %v617
    %619 = vdwg.mxu0
    %620 = vmatprep.subr.mxu0 %v69
    %621 = vmatpush1.msra.mxu0 %v68
    %622 = vmatprep.subr.mxu0 %v73
    %623 = vmatpush1.msra.mxu0 %v72
    %624 = vmatprep.subr.mxu0 %v77
    %625 = vmatpush1.msra.mxu0 %v76
    %626 = vmatprep.subr.mxu0 %v81
    %627 = vmatpush1.msra.mxu0 %v80
    %628 = vmatprep.subr.mxu0 %v85
    %629 = vmatpush1.msra.mxu0 %v84
    %630 = vmatprep.subr.mxu0 %v89
    %631 = vmatpush1.msra.mxu0 %v88
    %632 = vmatprep.subr.mxu0 %v93
    %633 = vmatpush1.msra.mxu0 %v92
    %634 = vmatprep.subr.mxu0 %v97
    %635 = vmatpush1.msra.mxu0 %v96
    %636 = vmatprep.subr.mxu0 %v101
    %637 = vmatpush1.msra.mxu0 %v100
    %638 = vmatprep.subr.mxu0 %v105
    %639 = vmatpush1.msra.mxu0 %v104
    %640 = vmatprep.subr.mxu0 %v109
    %641 = vmatpush1.msra.mxu0 %v108
    %642 = vmatprep.subr.mxu0 %v113
    %643 = vmatpush1.msra.mxu0 %v112
    %644 = vmatprep.subr.mxu0 %v117
    %645 = vmatpush1.msra.mxu0 %v116
    %646 = vmatprep.subr.mxu0 %v121
    %647 = vmatpush1.msra.mxu0 %v120
    %648 = vmatprep.subr.mxu0 %v125
    %649 = vmatpush1.msra.mxu0 %v124
    %650 = vmatprep.subr.mxu0 %v129
    %651 = vmatpush1.msra.mxu0 %v128
    %652 = vmatprep.subr.mxu0 %v133
    %653 = vmatpush1.msra.mxu0 %v132
    %654 = vmatprep.subr.mxu0 %v137
    %655 = vmatpush1.msra.mxu0 %v136
    %656 = vmatprep.subr.mxu0 %v141
    %657 = vmatpush1.msra.mxu0 %v140
    %658 = vmatprep.subr.mxu0 %v145
    %659 = vmatpush1.msra.mxu0 %v144
    %660 = vmatprep.subr.mxu0 %v149
    %661 = vmatpush1.msra.mxu0 %v148
    %662 = vmatprep.subr.mxu0 %v153
    %663 = vmatpush1.msra.mxu0 %v152
    %664 = vmatprep.subr.mxu0 %v157
    %665 = vmatpush1.msra.mxu0 %v156
    %666 = vmatprep.subr.mxu0 %v161
    %667 = vmatpush1.msra.mxu0 %v160
    %668 = vmatprep.subr.mxu0 %v165
    %669 = vmatpush1.msra.mxu0 %v164
    %670 = vmatprep.subr.mxu0 %v169
    %671 = vmatpush1.msra.mxu0 %v168
    %672 = vmatprep.subr.mxu0 %v173
    %673 = vmatpush1.msra.mxu0 %v172
    %674 = vmatprep.subr.mxu0 %v177
    %675 = vmatpush1.msra.mxu0 %v176
    %676 = vmatprep.subr.mxu0 %v181
    %677 = vmatpush1.msra.mxu0 %v180
    %678 = vmatprep.subr.mxu0 %v185
    %679 = vmatpush1.msra.mxu0 %v184
    %680 = vmatprep.subr.mxu0 %v189
    %681 = vmatpush1.msra.mxu0 %v188
    %682 = vmatprep.subr.mxu0 %v193
    %683 = vmatpush1.msra.mxu0 %v192
    %684 = vmatprep.mubr.f32.mxu0 %v545
    %685 = vmatmul.mubr.f32.gmra.mrb[0].mxu0 %v548
    %v686 = vpop.f32.mrb[0].mxu0
    %v687 = vadd.f32 %v210, %v686
    %v688 = vpop.f32.mrb[0].mxu0
    %v689 = vadd.f32 %v214, %v688
    %690 = vdwg.mxu0
    %v691 = vxor.u32 %v616, 2147483648
    %v692 = vmul.f32 %v691, 1.442695
    %v693 = vpow.pop %v692
    %v694 = vadd.f32 %v693, 1.0
    %v695 = vrcp.pop %v694
    %v696 = vmul.f32 1.0, %v695
    %v697 = vxor.u32 %v618, 2147483648
    %v698 = vmul.f32 %v697, 1.442695
    %v699 = vpow.pop %v698
    %v700 = vadd.f32 %v699, 1.0
    %v701 = vrcp.pop %v700
    %v702 = vmul.f32 1.0, %v701
    %v703 = vsub.f32 %v696, 1.0
    %v704 = vmul.f32 %v703, %v689
    %v705 = vadd.f32 %v687, %v704
    %v706 = vtanh.pop %v705
    %v707 = vsub.f32 1.0, %v702
    %v708 = vmul.f32 %v707, %v706
    %v709 = vmul.f32 %v702, %v545
    %v710 = vadd.f32 %v708, %v709
    %711 = vst [vmem:[#allocation2 + $0x2] sm:$0x1] %v710
    %v712 = vld [vmem:[#allocation3 + $0x3] sm:$0x1]
    %v713 = vmax.f32 %v712, 0.0
    %714 = vmatprep.subr.mxu0 %v67
    %715 = vmatpush1.msra.mxu0 %v66
    %716 = vmatprep.subr.mxu0 %v71
    %717 = vmatpush1.msra.mxu0 %v70
    %718 = vmatprep.subr.mxu0 %v75
    %719 = vmatpush1.msra.mxu0 %v74
    %720 = vmatprep.subr.mxu0 %v79
    %721 = vmatpush1.msra.mxu0 %v78
    %722 = vmatprep.subr.mxu0 %v83
    %723 = vmatpush1.msra.mxu0 %v82
    %724 = vmatprep.subr.mxu0 %v87
    %725 = vmatpush1.msra.mxu0 %v86
    %726 = vmatprep.subr.mxu0 %v91
    %727 = vmatpush1.msra.mxu0 %v90
    %728 = vmatprep.subr.mxu0 %v95
    %729 = vmatpush1.msra.mxu0 %v94
    %730 = vmatprep.subr.mxu0 %v99
    %731 = vmatpush1.msra.mxu0 %v98
    %732 = vmatprep.subr.mxu0 %v103
    %733 = vmatpush1.msra.mxu0 %v102
    %734 = vmatprep.subr.mxu0 %v107
    %735 = vmatpush1.msra.mxu0 %v106
    %736 = vmatprep.subr.mxu0 %v111
    %737 = vmatpush1.msra.mxu0 %v110
    %738 = vmatprep.subr.mxu0 %v115
    %739 = vmatpush1.msra.mxu0 %v114
    %740 = vmatprep.subr.mxu0 %v119
    %741 = vmatpush1.msra.mxu0 %v118
    %742 = vmatprep.subr.mxu0 %v123
    %743 = vmatpush1.msra.mxu0 %v122
    %744 = vmatprep.subr.mxu0 %v127
    %745 = vmatpush1.msra.mxu0 %v126
    %746 = vmatprep.subr.mxu0 %v131
    %747 = vmatpush1.msra.mxu0 %v130
    %748 = vmatprep.subr.mxu0 %v135
    %749 = vmatpush1.msra.mxu0 %v134
    %750 = vmatprep.subr.mxu0 %v139
    %751 = vmatpush1.msra.mxu0 %v138
    %752 = vmatprep.subr.mxu0 %v143
    %753 = vmatpush1.msra.mxu0 %v142
    %754 = vmatprep.subr.mxu0 %v147
    %755 = vmatpush1.msra.mxu0 %v146
    %756 = vmatprep.subr.mxu0 %v151
    %757 = vmatpush1.msra.mxu0 %v150
    %758 = vmatprep.subr.mxu0 %v155
    %759 = vmatpush1.msra.mxu0 %v154
    %760 = vmatprep.subr.mxu0 %v159
    %761 = vmatpush1.msra.mxu0 %v158
    %762 = vmatprep.subr.mxu0 %v163
    %763 = vmatpush1.msra.mxu0 %v162
    %764 = vmatprep.subr.mxu0 %v167
    %765 = vmatpush1.msra.mxu0 %v166
    %766 = vmatprep.subr.mxu0 %v171
    %767 = vmatpush1.msra.mxu0 %v170
    %768 = vmatprep.subr.mxu0 %v175
    %769 = vmatpush1.msra.mxu0 %v174
    %770 = vmatprep.subr.mxu0 %v179
    %771 = vmatpush1.msra.mxu0 %v178
    %772 = vmatprep.subr.mxu0 %v183
    %773 = vmatpush1.msra.mxu0 %v182
    %774 = vmatprep.subr.mxu0 %v187
    %775 = vmatpush1.msra.mxu0 %v186
    %776 = vmatprep.subr.mxu0 %v191
    %777 = vmatpush1.msra.mxu0 %v190
    %778 = vmatprep.mubr.f32.mxu0 %v710
    %779 = vmatmul.mubr.f32.gmra.mrb[0].mxu0 %v713
    %v780 = vpop.f32.mrb[0].mxu0
    %v781 = vadd.f32 %v202, %v780
    %v782 = vpop.f32.mrb[0].mxu0
    %v783 = vadd.f32 %v206, %v782
    %784 = vdwg.mxu0
    %785 = vmatprep.subr.mxu0 %v69
    %786 = vmatpush1.msra.mxu0 %v68
    %787 = vmatprep.subr.mxu0 %v73
    %788 = vmatpush1.msra.mxu0 %v72
    %789 = vmatprep.subr.mxu0 %v77
    %790 = vmatpush1.msra.mxu0 %v76
    %791 = vmatprep.subr.mxu0 %v81
    %792 = vmatpush1.msra.mxu0 %v80
    %793 = vmatprep.subr.mxu0 %v85
    %794 = vmatpush1.msra.mxu0 %v84
    %795 = vmatprep.subr.mxu0 %v89
    %796 = vmatpush1.msra.mxu0 %v88
    %797 = vmatprep.subr.mxu0 %v93
    %798 = vmatpush1.msra.mxu0 %v92
    %799 = vmatprep.subr.mxu0 %v97
    %800 = vmatpush1.msra.mxu0 %v96
    %801 = vmatprep.subr.mxu0 %v101
    %802 = vmatpush1.msra.mxu0 %v100
    %803 = vmatprep.subr.mxu0 %v105
    %804 = vmatpush1.msra.mxu0 %v104
    %805 = vmatprep.subr.mxu0 %v109
    %806 = vmatpush1.msra.mxu0 %v108
    %807 = vmatprep.subr.mxu0 %v113
    %808 = vmatpush1.msra.mxu0 %v112
    %809 = vmatprep.subr.mxu0 %v117
    %810 = vmatpush1.msra.mxu0 %v116
    %811 = vmatprep.subr.mxu0 %v121
    %812 = vmatpush1.msra.mxu0 %v120
    %813 = vmatprep.subr.mxu0 %v125
    %814 = vmatpush1.msra.mxu0 %v124
    %815 = vmatprep.subr.mxu0 %v129
    %816 = vmatpush1.msra.mxu0 %v128
    %817 = vmatprep.subr.mxu0 %v133
    %818 = vmatpush1.msra.mxu0 %v132
    %819 = vmatprep.subr.mxu0 %v137
    %820 = vmatpush1.msra.mxu0 %v136
    %821 = vmatprep.subr.mxu0 %v141
    %822 = vmatpush1.msra.mxu0 %v140
    %823 = vmatprep.subr.mxu0 %v145
    %824 = vmatpush1.msra.mxu0 %v144
    %825 = vmatprep.subr.mxu0 %v149
    %826 = vmatpush1.msra.mxu0 %v148
    %827 = vmatprep.subr.mxu0 %v153
    %828 = vmatpush1.msra.mxu0 %v152
    %829 = vmatprep.subr.mxu0 %v157
    %830 = vmatpush1.msra.mxu0 %v156
    %831 = vmatprep.subr.mxu0 %v161
    %832 = vmatpush1.msra.mxu0 %v160
    %833 = vmatprep.subr.mxu0 %v165
    %834 = vmatpush1.msra.mxu0 %v164
    %835 = vmatprep.subr.mxu0 %v169
    %836 = vmatpush1.msra.mxu0 %v168
    %837 = vmatprep.subr.mxu0 %v173
    %838 = vmatpush1.msra.mxu0 %v172
    %839 = vmatprep.subr.mxu0 %v177
    %840 = vmatpush1.msra.mxu0 %v176
    %841 = vmatprep.subr.mxu0 %v181
    %842 = vmatpush1.msra.mxu0 %v180
    %843 = vmatprep.subr.mxu0 %v185
    %844 = vmatpush1.msra.mxu0 %v184
    %845 = vmatprep.subr.mxu0 %v189
    %846 = vmatpush1.msra.mxu0 %v188
    %847 = vmatprep.subr.mxu0 %v193
    %848 = vmatpush1.msra.mxu0 %v192
    %849 = vmatprep.mubr.f32.mxu0 %v710
    %850 = vmatmul.mubr.f32.gmra.mrb[0].mxu0 %v713
    %v851 = vpop.f32.mrb[0].mxu0
    %v852 = vadd.f32 %v210, %v851
    %v853 = vpop.f32.mrb[0].mxu0
    %v854 = vadd.f32 %v214, %v853
    %855 = vdwg.mxu0
    %v856 = vxor.u32 %v781, 2147483648
    %v857 = vmul.f32 %v856, 1.442695
    %v858 = vpow.pop %v857
    %v859 = vadd.f32 %v858, 1.0
    %v860 = vrcp.pop %v859
    %v861 = vmul.f32 1.0, %v860
    %v862 = vxor.u32 %v783, 2147483648
    %v863 = vmul.f32 %v862, 1.442695
    %v864 = vpow.pop %v863
    %v865 = vadd.f32 %v864, 1.0
    %v866 = vrcp.pop %v865
    %v867 = vmul.f32 1.0, %v866
    %v868 = vsub.f32 %v861, 1.0
    %v869 = vmul.f32 %v868, %v854
    %v870 = vadd.f32 %v852, %v869
    %v871 = vtanh.pop %v870
    %v872 = vsub.f32 1.0, %v867
    %v873 = vmul.f32 %v872, %v871
    %v874 = vmul.f32 %v867, %v710
    %v875 = vadd.f32 %v873, %v874
    %876 = vst [vmem:[#allocation2 + $0x3] sm:$0x1] %v875
    %v877 = vld [vmem:[#allocation3 + $0x4] sm:$0x1]
    %v878 = vmax.f32 %v877, 0.0
    %879 = vmatprep.subr.mxu0 %v67
    %880 = vmatpush1.msra.mxu0 %v66
    %881 = vmatprep.subr.mxu0 %v71
    %882 = vmatpush1.msra.mxu0 %v70
    %883 = vmatprep.subr.mxu0 %v75
    %884 = vmatpush1.msra.mxu0 %v74
    %885 = vmatprep.subr.mxu0 %v79
    %886 = vmatpush1.msra.mxu0 %v78
    %887 = vmatprep.subr.mxu0 %v83
    %888 = vmatpush1.msra.mxu0 %v82
    %889 = vmatprep.subr.mxu0 %v87
    %890 = vmatpush1.msra.mxu0 %v86
    %891 = vmatprep.subr.mxu0 %v91
    %892 = vmatpush1.msra.mxu0 %v90
    %893 = vmatprep.subr.mxu0 %v95
    %894 = vmatpush1.msra.mxu0 %v94
    %895 = vmatprep.subr.mxu0 %v99
    %896 = vmatpush1.msra.mxu0 %v98
    %897 = vmatprep.subr.mxu0 %v103
    %898 = vmatpush1.msra.mxu0 %v102
    %899 = vmatprep.subr.mxu0 %v107
    %900 = vmatpush1.msra.mxu0 %v106
    %901 = vmatprep.subr.mxu0 %v111
    %902 = vmatpush1.msra.mxu0 %v110
    %903 = vmatprep.subr.mxu0 %v115
    %904 = vmatpush1.msra.mxu0 %v114
    %905 = vmatprep.subr.mxu0 %v119
    %906 = vmatpush1.msra.mxu0 %v118
    %907 = vmatprep.subr.mxu0 %v123
    %908 = vmatpush1.msra.mxu0 %v122
    %909 = vmatprep.subr.mxu0 %v127
    %910 = vmatpush1.msra.mxu0 %v126
    %911 = vmatprep.subr.mxu0 %v131
    %912 = vmatpush1.msra.mxu0 %v130
    %913 = vmatprep.subr.mxu0 %v135
    %914 = vmatpush1.msra.mxu0 %v134
    %915 = vmatprep.subr.mxu0 %v139
    %916 = vmatpush1.msra.mxu0 %v138
    %917 = vmatprep.subr.mxu0 %v143
    %918 = vmatpush1.msra.mxu0 %v142
    %919 = vmatprep.subr.mxu0 %v147
    %920 = vmatpush1.msra.mxu0 %v146
    %921 = vmatprep.subr.mxu0 %v151
    %922 = vmatpush1.msra.mxu0 %v150
    %923 = vmatprep.subr.mxu0 %v155
    %924 = vmatpush1.msra.mxu0 %v154
    %925 = vmatprep.subr.mxu0 %v159
    %926 = vmatpush1.msra.mxu0 %v158
    %927 = vmatprep.subr.mxu0 %v163
    %928 = vmatpush1.msra.mxu0 %v162
    %929 = vmatprep.subr.mxu0 %v167
    %930 = vmatpush1.msra.mxu0 %v166
    %931 = vmatprep.subr.mxu0 %v171
    %932 = vmatpush1.msra.mxu0 %v170
    %933 = vmatprep.subr.mxu0 %v175
    %934 = vmatpush1.msra.mxu0 %v174
    %935 = vmatprep.subr.mxu0 %v179
    %936 = vmatpush1.msra.mxu0 %v178
    %937 = vmatprep.subr.mxu0 %v183
    %938 = vmatpush1.msra.mxu0 %v182
    %939 = vmatprep.subr.mxu0 %v187
    %940 = vmatpush1.msra.mxu0 %v186
    %941 = vmatprep.subr.mxu0 %v191
    %942 = vmatpush1.msra.mxu0 %v190
    %943 = vmatprep.mubr.f32.mxu0 %v875
    %944 = vmatmul.mubr.f32.gmra.mrb[0].mxu0 %v878
    %v945 = vpop.f32.mrb[0].mxu0
    %v946 = vadd.f32 %v202, %v945
    %v947 = vpop.f32.mrb[0].mxu0
    %v948 = vadd.f32 %v206, %v947
    %949 = vdwg.mxu0
    %950 = vmatprep.subr.mxu0 %v69
    %951 = vmatpush1.msra.mxu0 %v68
    %952 = vmatprep.subr.mxu0 %v73
    %953 = vmatpush1.msra.mxu0 %v72
    %954 = vmatprep.subr.mxu0 %v77
    %955 = vmatpush1.msra.mxu0 %v76
    %956 = vmatprep.subr.mxu0 %v81
    %957 = vmatpush1.msra.mxu0 %v80
    %958 = vmatprep.subr.mxu0 %v85
    %959 = vmatpush1.msra.mxu0 %v84
    %960 = vmatprep.subr.mxu0 %v89
    %961 = vmatpush1.msra.mxu0 %v88
    %962 = vmatprep.subr.mxu0 %v93
    %963 = vmatpush1.msra.mxu0 %v92
    %964 = vmatprep.subr.mxu0 %v97
    %965 = vmatpush1.msra.mxu0 %v96
    %966 = vmatprep.subr.mxu0 %v101
    %967 = vmatpush1.msra.mxu0 %v100
    %968 = vmatprep.subr.mxu0 %v105
    %969 = vmatpush1.msra.mxu0 %v104
    %970 = vmatprep.subr.mxu0 %v109
    %971 = vmatpush1.msra.mxu0 %v108
    %972 = vmatprep.subr.mxu0 %v113
    %973 = vmatpush1.msra.mxu0 %v112
    %974 = vmatprep.subr.mxu0 %v117
    %975 = vmatpush1.msra.mxu0 %v116
    %976 = vmatprep.subr.mxu0 %v121
    %977 = vmatpush1.msra.mxu0 %v120
    %978 = vmatprep.subr.mxu0 %v125
    %979 = vmatpush1.msra.mxu0 %v124
    %980 = vmatprep.subr.mxu0 %v129
    %981 = vmatpush1.msra.mxu0 %v128
    %982 = vmatprep.subr.mxu0 %v133
    %983 = vmatpush1.msra.mxu0 %v132
    %984 = vmatprep.subr.mxu0 %v137
    %985 = vmatpush1.msra.mxu0 %v136
    %986 = vmatprep.subr.mxu0 %v141
    %987 = vmatpush1.msra.mxu0 %v140
    %988 = vmatprep.subr.mxu0 %v145
    %989 = vmatpush1.msra.mxu0 %v144
    %990 = vmatprep.subr.mxu0 %v149
    %991 = vmatpush1.msra.mxu0 %v148
    %992 = vmatprep.subr.mxu0 %v153
    %993 = vmatpush1.msra.mxu0 %v152
    %994 = vmatprep.subr.mxu0 %v157
    %995 = vmatpush1.msra.mxu0 %v156
    %996 = vmatprep.subr.mxu0 %v161
    %997 = vmatpush1.msra.mxu0 %v160
    %998 = vmatprep.subr.mxu0 %v165
    %999 = vmatpush1.msra.mxu0 %v164
    %1000 = vmatprep.subr.mxu0 %v169
    %1001 = vmatpush1.msra.mxu0 %v168
    %1002 = vmatprep.subr.mxu0 %v173
    %1003 = vmatpush1.msra.mxu0 %v172
    %1004 = vmatprep.subr.mxu0 %v177
    %1005 = vmatpush1.msra.mxu0 %v176
    %1006 = vmatprep.subr.mxu0 %v181
    %1007 = vmatpush1.msra.mxu0 %v180
    %1008 = vmatprep.subr.mxu0 %v185
    %1009 = vmatpush1.msra.mxu0 %v184
    %1010 = vmatprep.subr.mxu0 %v189
    %1011 = vmatpush1.msra.mxu0 %v188
    %1012 = vmatprep.subr.mxu0 %v193
    %1013 = vmatpush1.msra.mxu0 %v192
    %1014 = vmatprep.mubr.f32.mxu0 %v875
    %1015 = vmatmul.mubr.f32.gmra.mrb[0].mxu0 %v878
    %v1016 = vpop.f32.mrb[0].mxu0
    %v1017 = vadd.f32 %v210, %v1016
    %v1018 = vpop.f32.mrb[0].mxu0
    %v1019 = vadd.f32 %v214, %v1018
    %1020 = vdwg.mxu0
    %v1021 = vxor.u32 %v946, 2147483648
    %v1022 = vmul.f32 %v1021, 1.442695
    %v1023 = vpow.pop %v1022
    %v1024 = vadd.f32 %v1023, 1.0
    %v1025 = vrcp.pop %v1024
    %v1026 = vmul.f32 1.0, %v1025
    %v1027 = vxor.u32 %v948, 2147483648
    %v1028 = vmul.f32 %v1027, 1.442695
    %v1029 = vpow.pop %v1028
    %v1030 = vadd.f32 %v1029, 1.0
    %v1031 = vrcp.pop %v1030
    %v1032 = vmul.f32 1.0, %v1031
    %v1033 = vsub.f32 %v1026, 1.0
    %v1034 = vmul.f32 %v1033, %v1019
    %v1035 = vadd.f32 %v1017, %v1034
    %v1036 = vtanh.pop %v1035
    %v1037 = vsub.f32 1.0, %v1032
    %v1038 = vmul.f32 %v1037, %v1036
    %v1039 = vmul.f32 %v1032, %v875
    %v1040 = vadd.f32 %v1038, %v1039
    %1041 = vst [vmem:[#allocation2 + $0x4] sm:$0x1] %v1040
    %v1042 = vld [vmem:[#allocation3 + $0x5] sm:$0x1]
    %v1043 = vmax.f32 %v1042, 0.0
    %1044 = vmatprep.subr.mxu0 %v67
    %1045 = vmatpush1.msra.mxu0 %v66
    %1046 = vmatprep.subr.mxu0 %v71
    %1047 = vmatpush1.msra.mxu0 %v70
    %1048 = vmatprep.subr.mxu0 %v75
    %1049 = vmatpush1.msra.mxu0 %v74
    %1050 = vmatprep.subr.mxu0 %v79
    %1051 = vmatpush1.msra.mxu0 %v78
    %1052 = vmatprep.subr.mxu0 %v83
    %1053 = vmatpush1.msra.mxu0 %v82
    %1054 = vmatprep.subr.mxu0 %v87
    %1055 = vmatpush1.msra.mxu0 %v86
    %1056 = vmatprep.subr.mxu0 %v91
    %1057 = vmatpush1.msra.mxu0 %v90
    %1058 = vmatprep.subr.mxu0 %v95
    %1059 = vmatpush1.msra.mxu0 %v94
    %1060 = vmatprep.subr.mxu0 %v99
    %1061 = vmatpush1.msra.mxu0 %v98
    %1062 = vmatprep.subr.mxu0 %v103
    %1063 = vmatpush1.msra.mxu0 %v102
    %1064 = vmatprep.subr.mxu0 %v107
    %1065 = vmatpush1.msra.mxu0 %v106
    %1066 = vmatprep.subr.mxu0 %v111
    %1067 = vmatpush1.msra.mxu0 %v110
    %1068 = vmatprep.subr.mxu0 %v115
    %1069 = vmatpush1.msra.mxu0 %v114
    %1070 = vmatprep.subr.mxu0 %v119
    %1071 = vmatpush1.msra.mxu0 %v118
    %1072 = vmatprep.subr.mxu0 %v123
    %1073 = vmatpush1.msra.mxu0 %v122
    %1074 = vmatprep.subr.mxu0 %v127
    %1075 = vmatpush1.msra.mxu0 %v126
    %1076 = vmatprep.subr.mxu0 %v131
    %1077 = vmatpush1.msra.mxu0 %v130
    %1078 = vmatprep.subr.mxu0 %v135
    %1079 = vmatpush1.msra.mxu0 %v134
    %1080 = vmatprep.subr.mxu0 %v139
    %1081 = vmatpush1.msra.mxu0 %v138
    %1082 = vmatprep.subr.mxu0 %v143
    %1083 = vmatpush1.msra.mxu0 %v142
    %1084 = vmatprep.subr.mxu0 %v147
    %1085 = vmatpush1.msra.mxu0 %v146
    %1086 = vmatprep.subr.mxu0 %v151
    %1087 = vmatpush1.msra.mxu0 %v150
    %1088 = vmatprep.subr.mxu0 %v155
    %1089 = vmatpush1.msra.mxu0 %v154
    %1090 = vmatprep.subr.mxu0 %v159
    %1091 = vmatpush1.msra.mxu0 %v158
    %1092 = vmatprep.subr.mxu0 %v163
    %1093 = vmatpush1.msra.mxu0 %v162
    %1094 = vmatprep.subr.mxu0 %v167
    %1095 = vmatpush1.msra.mxu0 %v166
    %1096 = vmatprep.subr.mxu0 %v171
    %1097 = vmatpush1.msra.mxu0 %v170
    %1098 = vmatprep.subr.mxu0 %v175
    %1099 = vmatpush1.msra.mxu0 %v174
    %1100 = vmatprep.subr.mxu0 %v179
    %1101 = vmatpush1.msra.mxu0 %v178
    %1102 = vmatprep.subr.mxu0 %v183
    %1103 = vmatpush1.msra.mxu0 %v182
    %1104 = vmatprep.subr.mxu0 %v187
    %1105 = vmatpush1.msra.mxu0 %v186
    %1106 = vmatprep.subr.mxu0 %v191
    %1107 = vmatpush1.msra.mxu0 %v190
    %1108 = vmatprep.mubr.f32.mxu0 %v1040
    %1109 = vmatmul.mubr.f32.gmra.mrb[0].mxu0 %v1043
    %v1110 = vpop.f32.mrb[0].mxu0
    %v1111 = vadd.f32 %v202, %v1110
    %v1112 = vpop.f32.mrb[0].mxu0
    %v1113 = vadd.f32 %v206, %v1112
    %1114 = vdwg.mxu0
    %1115 = vmatprep.subr.mxu0 %v69
    %1116 = vmatpush1.msra.mxu0 %v68
    %1117 = vmatprep.subr.mxu0 %v73
    %1118 = vmatpush1.msra.mxu0 %v72
    %1119 = vmatprep.subr.mxu0 %v77
    %1120 = vmatpush1.msra.mxu0 %v76
    %1121 = vmatprep.subr.mxu0 %v81
    %1122 = vmatpush1.msra.mxu0 %v80
    %1123 = vmatprep.subr.mxu0 %v85
    %1124 = vmatpush1.msra.mxu0 %v84
    %1125 = vmatprep.subr.mxu0 %v89
    %1126 = vmatpush1.msra.mxu0 %v88
    %1127 = vmatprep.subr.mxu0 %v93
    %1128 = vmatpush1.msra.mxu0 %v92
    %1129 = vmatprep.subr.mxu0 %v97
    %1130 = vmatpush1.msra.mxu0 %v96
    %1131 = vmatprep.subr.mxu0 %v101
    %1132 = vmatpush1.msra.mxu0 %v100
    %1133 = vmatprep.subr.mxu0 %v105
    %1134 = vmatpush1.msra.mxu0 %v104
    %1135 = vmatprep.subr.mxu0 %v109
    %1136 = vmatpush1.msra.mxu0 %v108
    %1137 = vmatprep.subr.mxu0 %v113
    %1138 = vmatpush1.msra.mxu0 %v112
    %1139 = vmatprep.subr.mxu0 %v117
    %1140 = vmatpush1.msra.mxu0 %v116
    %1141 = vmatprep.subr.mxu0 %v121
    %1142 = vmatpush1.msra.mxu0 %v120
    %1143 = vmatprep.subr.mxu0 %v125
    %1144 = vmatpush1.msra.mxu0 %v124
    %1145 = vmatprep.subr.mxu0 %v129
    %1146 = vmatpush1.msra.mxu0 %v128
    %1147 = vmatprep.subr.mxu0 %v133
    %1148 = vmatpush1.msra.mxu0 %v132
    %1149 = vmatprep.subr.mxu0 %v137
    %1150 = vmatpush1.msra.mxu0 %v136
    %1151 = vmatprep.subr.mxu0 %v141
    %1152 = vmatpush1.msra.mxu0 %v140
    %1153 = vmatprep.subr.mxu0 %v145
    %1154 = vmatpush1.msra.mxu0 %v144
    %1155 = vmatprep.subr.mxu0 %v149
    %1156 = vmatpush1.msra.mxu0 %v148
    %1157 = vmatprep.subr.mxu0 %v153
    %1158 = vmatpush1.msra.mxu0 %v152
    %1159 = vmatprep.subr.mxu0 %v157
    %1160 = vmatpush1.msra.mxu0 %v156
    %1161 = vmatprep.subr.mxu0 %v161
    %1162 = vmatpush1.msra.mxu0 %v160
    %1163 = vmatprep.subr.mxu0 %v165
    %1164 = vmatpush1.msra.mxu0 %v164
    %1165 = vmatprep.subr.mxu0 %v169
    %1166 = vmatpush1.msra.mxu0 %v168
    %1167 = vmatprep.subr.mxu0 %v173
    %1168 = vmatpush1.msra.mxu0 %v172
    %1169 = vmatprep.subr.mxu0 %v177
    %1170 = vmatpush1.msra.mxu0 %v176
    %1171 = vmatprep.subr.mxu0 %v181
    %1172 = vmatpush1.msra.mxu0 %v180
    %1173 = vmatprep.subr.mxu0 %v185
    %1174 = vmatpush1.msra.mxu0 %v184
    %1175 = vmatprep.subr.mxu0 %v189
    %1176 = vmatpush1.msra.mxu0 %v188
    %1177 = vmatprep.subr.mxu0 %v193
    %1178 = vmatpush1.msra.mxu0 %v192
    %1179 = vmatprep.mubr.f32.mxu0 %v1040
    %1180 = vmatmul.mubr.f32.gmra.mrb[0].mxu0 %v1043
    %v1181 = vpop.f32.mrb[0].mxu0
    %v1182 = vadd.f32 %v210, %v1181
    %v1183 = vpop.f32.mrb[0].mxu0
    %v1184 = vadd.f32 %v214, %v1183
    %1185 = vdwg.mxu0
    %v1186 = vxor.u32 %v1111, 2147483648
    %v1187 = vmul.f32 %v1186, 1.442695
    %v1188 = vpow.pop %v1187
    %v1189 = vadd.f32 %v1188, 1.0
    %v1190 = vrcp.pop %v1189
    %v1191 = vmul.f32 1.0, %v1190
    %v1192 = vxor.u32 %v1113, 2147483648
    %v1193 = vmul.f32 %v1192, 1.442695
    %v1194 = vpow.pop %v1193
    %v1195 = vadd.f32 %v1194, 1.0
    %v1196 = vrcp.pop %v1195
    %v1197 = vmul.f32 1.0, %v1196
    %v1198 = vsub.f32 %v1191, 1.0
    %v1199 = vmul.f32 %v1198, %v1184
    %v1200 = vadd.f32 %v1182, %v1199
    %v1201 = vtanh.pop %v1200
    %v1202 = vsub.f32 1.0, %v1197
    %v1203 = vmul.f32 %v1202, %v1201
    %v1204 = vmul.f32 %v1197, %v1040
    %v1205 = vadd.f32 %v1203, %v1204
    %1206 = vst [vmem:[#allocation2 + $0x5] sm:$0x1] %v1205
    %v1207 = vld [vmem:[#allocation3 + $0x6] sm:$0x1]
    %v1208 = vmax.f32 %v1207, 0.0
    %1209 = vmatprep.subr.mxu0 %v67
    %1210 = vmatpush1.msra.mxu0 %v66
    %1211 = vmatprep.subr.mxu0 %v71
    %1212 = vmatpush1.msra.mxu0 %v70
    %1213 = vmatprep.subr.mxu0 %v75
    %1214 = vmatpush1.msra.mxu0 %v74
    %1215 = vmatprep.subr.mxu0 %v79
    %1216 = vmatpush1.msra.mxu0 %v78
    %1217 = vmatprep.subr.mxu0 %v83
    %1218 = vmatpush1.msra.mxu0 %v82
    %1219 = vmatprep.subr.mxu0 %v87
    %1220 = vmatpush1.msra.mxu0 %v86
    %1221 = vmatprep.subr.mxu0 %v91
    %1222 = vmatpush1.msra.mxu0 %v90
    %1223 = vmatprep.subr.mxu0 %v95
    %1224 = vmatpush1.msra.mxu0 %v94
    %1225 = vmatprep.subr.mxu0 %v99
    %1226 = vmatpush1.msra.mxu0 %v98
    %1227 = vmatprep.subr.mxu0 %v103
    %1228 = vmatpush1.msra.mxu0 %v102
    %1229 = vmatprep.subr.mxu0 %v107
    %1230 = vmatpush1.msra.mxu0 %v106
    %1231 = vmatprep.subr.mxu0 %v111
    %1232 = vmatpush1.msra.mxu0 %v110
    %1233 = vmatprep.subr.mxu0 %v115
    %1234 = vmatpush1.msra.mxu0 %v114
    %1235 = vmatprep.subr.mxu0 %v119
    %1236 = vmatpush1.msra.mxu0 %v118
    %1237 = vmatprep.subr.mxu0 %v123
    %1238 = vmatpush1.msra.mxu0 %v122
    %1239 = vmatprep.subr.mxu0 %v127
    %1240 = vmatpush1.msra.mxu0 %v126
    %1241 = vmatprep.subr.mxu0 %v131
    %1242 = vmatpush1.msra.mxu0 %v130
    %1243 = vmatprep.subr.mxu0 %v135
    %1244 = vmatpush1.msra.mxu0 %v134
    %1245 = vmatprep.subr.mxu0 %v139
    %1246 = vmatpush1.msra.mxu0 %v138
    %1247 = vmatprep.subr.mxu0 %v143
    %1248 = vmatpush1.msra.mxu0 %v142
    %1249 = vmatprep.subr.mxu0 %v147
    %1250 = vmatpush1.msra.mxu0 %v146
    %1251 = vmatprep.subr.mxu0 %v151
    %1252 = vmatpush1.msra.mxu0 %v150
    %1253 = vmatprep.subr.mxu0 %v155
    %1254 = vmatpush1.msra.mxu0 %v154
    %1255 = vmatprep.subr.mxu0 %v159
    %1256 = vmatpush1.msra.mxu0 %v158
    %1257 = vmatprep.subr.mxu0 %v163
    %1258 = vmatpush1.msra.mxu0 %v162
    %1259 = vmatprep.subr.mxu0 %v167
    %1260 = vmatpush1.msra.mxu0 %v166
    %1261 = vmatprep.subr.mxu0 %v171
    %1262 = vmatpush1.msra.mxu0 %v170
    %1263 = vmatprep.subr.mxu0 %v175
    %1264 = vmatpush1.msra.mxu0 %v174
    %1265 = vmatprep.subr.mxu0 %v179
    %1266 = vmatpush1.msra.mxu0 %v178
    %1267 = vmatprep.subr.mxu0 %v183
    %1268 = vmatpush1.msra.mxu0 %v182
    %1269 = vmatprep.subr.mxu0 %v187
    %1270 = vmatpush1.msra.mxu0 %v186
    %1271 = vmatprep.subr.mxu0 %v191
    %1272 = vmatpush1.msra.mxu0 %v190
    %1273 = vmatprep.mubr.f32.mxu0 %v1205
    %1274 = vmatmul.mubr.f32.gmra.mrb[0].mxu0 %v1208
    %v1275 = vpop.f32.mrb[0].mxu0
    %v1276 = vadd.f32 %v202, %v1275
    %v1277 = vpop.f32.mrb[0].mxu0
    %v1278 = vadd.f32 %v206, %v1277
    %1279 = vdwg.mxu0
    %1280 = vmatprep.subr.mxu0 %v69
    %1281 = vmatpush1.msra.mxu0 %v68
    %1282 = vmatprep.subr.mxu0 %v73
    %1283 = vmatpush1.msra.mxu0 %v72
    %1284 = vmatprep.subr.mxu0 %v77
    %1285 = vmatpush1.msra.mxu0 %v76
    %1286 = vmatprep.subr.mxu0 %v81
    %1287 = vmatpush1.msra.mxu0 %v80
    %1288 = vmatprep.subr.mxu0 %v85
    %1289 = vmatpush1.msra.mxu0 %v84
    %1290 = vmatprep.subr.mxu0 %v89
    %1291 = vmatpush1.msra.mxu0 %v88
    %1292 = vmatprep.subr.mxu0 %v93
    %1293 = vmatpush1.msra.mxu0 %v92
    %1294 = vmatprep.subr.mxu0 %v97
    %1295 = vmatpush1.msra.mxu0 %v96
    %1296 = vmatprep.subr.mxu0 %v101
    %1297 = vmatpush1.msra.mxu0 %v100
    %1298 = vmatprep.subr.mxu0 %v105
    %1299 = vmatpush1.msra.mxu0 %v104
    %1300 = vmatprep.subr.mxu0 %v109
    %1301 = vmatpush1.msra.mxu0 %v108
    %1302 = vmatprep.subr.mxu0 %v113
    %1303 = vmatpush1.msra.mxu0 %v112
    %1304 = vmatprep.subr.mxu0 %v117
    %1305 = vmatpush1.msra.mxu0 %v116
    %1306 = vmatprep.subr.mxu0 %v121
    %1307 = vmatpush1.msra.mxu0 %v120
    %1308 = vmatprep.subr.mxu0 %v125
    %1309 = vmatpush1.msra.mxu0 %v124
    %1310 = vmatprep.subr.mxu0 %v129
    %1311 = vmatpush1.msra.mxu0 %v128
    %1312 = vmatprep.subr.mxu0 %v133
    %1313 = vmatpush1.msra.mxu0 %v132
    %1314 = vmatprep.subr.mxu0 %v137
    %1315 = vmatpush1.msra.mxu0 %v136
    %1316 = vmatprep.subr.mxu0 %v141
    %1317 = vmatpush1.msra.mxu0 %v140
    %1318 = vmatprep.subr.mxu0 %v145
    %1319 = vmatpush1.msra.mxu0 %v144
    %1320 = vmatprep.subr.mxu0 %v149
    %1321 = vmatpush1.msra.mxu0 %v148
    %1322 = vmatprep.subr.mxu0 %v153
    %1323 = vmatpush1.msra.mxu0 %v152
    %1324 = vmatprep.subr.mxu0 %v157
    %1325 = vmatpush1.msra.mxu0 %v156
    %1326 = vmatprep.subr.mxu0 %v161
    %1327 = vmatpush1.msra.mxu0 %v160
    %1328 = vmatprep.subr.mxu0 %v165
    %1329 = vmatpush1.msra.mxu0 %v164
    %1330 = vmatprep.subr.mxu0 %v169
    %1331 = vmatpush1.msra.mxu0 %v168
    %1332 = vmatprep.subr.mxu0 %v173
    %1333 = vmatpush1.msra.mxu0 %v172
    %1334 = vmatprep.subr.mxu0 %v177
    %1335 = vmatpush1.msra.mxu0 %v176
    %1336 = vmatprep.subr.mxu0 %v181
    %1337 = vmatpush1.msra.mxu0 %v180
    %1338 = vmatprep.subr.mxu0 %v185
    %1339 = vmatpush1.msra.mxu0 %v184
    %1340 = vmatprep.subr.mxu0 %v189
    %1341 = vmatpush1.msra.mxu0 %v188
    %1342 = vmatprep.subr.mxu0 %v193
    %1343 = vmatpush1.msra.mxu0 %v192
    %1344 = vmatprep.mubr.f32.mxu0 %v1205
    %1345 = vmatmul.mubr.f32.gmra.mrb[0].mxu0 %v1208
    %v1346 = vpop.f32.mrb[0].mxu0
    %v1347 = vadd.f32 %v210, %v1346
    %v1348 = vpop.f32.mrb[0].mxu0
    %v1349 = vadd.f32 %v214, %v1348
    %1350 = vdwg.mxu0
    %v1351 = vxor.u32 %v1276, 2147483648
    %v1352 = vmul.f32 %v1351, 1.442695
    %v1353 = vpow.pop %v1352
    %v1354 = vadd.f32 %v1353, 1.0
    %v1355 = vrcp.pop %v1354
    %v1356 = vmul.f32 1.0, %v1355
    %v1357 = vxor.u32 %v1278, 2147483648
    %v1358 = vmul.f32 %v1357, 1.442695
    %v1359 = vpow.pop %v1358
    %v1360 = vadd.f32 %v1359, 1.0
    %v1361 = vrcp.pop %v1360
    %v1362 = vmul.f32 1.0, %v1361
    %v1363 = vsub.f32 %v1356, 1.0
    %v1364 = vmul.f32 %v1363, %v1349
    %v1365 = vadd.f32 %v1347, %v1364
    %v1366 = vtanh.pop %v1365
    %v1367 = vsub.f32 1.0, %v1362
    %v1368 = vmul.f32 %v1367, %v1366
    %v1369 = vmul.f32 %v1362, %v1205
    %v1370 = vadd.f32 %v1368, %v1369
    %1371 = vst [vmem:[#allocation2 + $0x6] sm:$0x1] %v1370
    %v1372 = vld [vmem:[#allocation3 + $0x7] sm:$0x1]
    %v1373 = vmax.f32 %v1372, 0.0
    %1374 = vmatprep.subr.mxu0 %v67
    %1375 = vmatpush1.msra.mxu0 %v66
    %1376 = vmatprep.subr.mxu0 %v71
    %1377 = vmatpush1.msra.mxu0 %v70
    %1378 = vmatprep.subr.mxu0 %v75
    %1379 = vmatpush1.msra.mxu0 %v74
    %1380 = vmatprep.subr.mxu0 %v79
    %1381 = vmatpush1.msra.mxu0 %v78
    %1382 = vmatprep.subr.mxu0 %v83
    %1383 = vmatpush1.msra.mxu0 %v82
    %1384 = vmatprep.subr.mxu0 %v87
    %1385 = vmatpush1.msra.mxu0 %v86
    %1386 = vmatprep.subr.mxu0 %v91
    %1387 = vmatpush1.msra.mxu0 %v90
    %1388 = vmatprep.subr.mxu0 %v95
    %1389 = vmatpush1.msra.mxu0 %v94
    %1390 = vmatprep.subr.mxu0 %v99
    %1391 = vmatpush1.msra.mxu0 %v98
    %1392 = vmatprep.subr.mxu0 %v103
    %1393 = vmatpush1.msra.mxu0 %v102
    %1394 = vmatprep.subr.mxu0 %v107
    %1395 = vmatpush1.msra.mxu0 %v106
    %1396 = vmatprep.subr.mxu0 %v111
    %1397 = vmatpush1.msra.mxu0 %v110
    %1398 = vmatprep.subr.mxu0 %v115
    %1399 = vmatpush1.msra.mxu0 %v114
    %1400 = vmatprep.subr.mxu0 %v119
    %1401 = vmatpush1.msra.mxu0 %v118
    %1402 = vmatprep.subr.mxu0 %v123
    %1403 = vmatpush1.msra.mxu0 %v122
    %1404 = vmatprep.subr.mxu0 %v127
    %1405 = vmatpush1.msra.mxu0 %v126
    %1406 = vmatprep.subr.mxu0 %v131
    %1407 = vmatpush1.msra.mxu0 %v130
    %1408 = vmatprep.subr.mxu0 %v135
    %1409 = vmatpush1.msra.mxu0 %v134
    %1410 = vmatprep.subr.mxu0 %v139
    %1411 = vmatpush1.msra.mxu0 %v138
    %1412 = vmatprep.subr.mxu0 %v143
    %1413 = vmatpush1.msra.mxu0 %v142
    %1414 = vmatprep.subr.mxu0 %v147
    %1415 = vmatpush1.msra.mxu0 %v146
    %1416 = vmatprep.subr.mxu0 %v151
    %1417 = vmatpush1.msra.mxu0 %v150
    %1418 = vmatprep.subr.mxu0 %v155
    %1419 = vmatpush1.msra.mxu0 %v154
    %1420 = vmatprep.subr.mxu0 %v159
    %1421 = vmatpush1.msra.mxu0 %v158
    %1422 = vmatprep.subr.mxu0 %v163
    %1423 = vmatpush1.msra.mxu0 %v162
    %1424 = vmatprep.subr.mxu0 %v167
    %1425 = vmatpush1.msra.mxu0 %v166
    %1426 = vmatprep.subr.mxu0 %v171
    %1427 = vmatpush1.msra.mxu0 %v170
    %1428 = vmatprep.subr.mxu0 %v175
    %1429 = vmatpush1.msra.mxu0 %v174
    %1430 = vmatprep.subr.mxu0 %v179
    %1431 = vmatpush1.msra.mxu0 %v178
    %1432 = vmatprep.subr.mxu0 %v183
    %1433 = vmatpush1.msra.mxu0 %v182
    %1434 = vmatprep.subr.mxu0 %v187
    %1435 = vmatpush1.msra.mxu0 %v186
    %1436 = vmatprep.subr.mxu0 %v191
    %1437 = vmatpush1.msra.mxu0 %v190
    %1438 = vmatprep.mubr.f32.mxu0 %v1370
    %1439 = vmatmul.mubr.f32.gmra.mrb[0].mxu0 %v1373
    %v1440 = vpop.f32.mrb[0].mxu0
    %v1441 = vadd.f32 %v202, %v1440
    %v1442 = vpop.f32.mrb[0].mxu0
    %v1443 = vadd.f32 %v206, %v1442
    %1444 = vdwg.mxu0
    %1445 = vmatprep.subr.mxu0 %v69
    %1446 = vmatpush1.msra.mxu0 %v68
    %1447 = vmatprep.subr.mxu0 %v73
    %1448 = vmatpush1.msra.mxu0 %v72
    %1449 = vmatprep.subr.mxu0 %v77
    %1450 = vmatpush1.msra.mxu0 %v76
    %1451 = vmatprep.subr.mxu0 %v81
    %1452 = vmatpush1.msra.mxu0 %v80
    %1453 = vmatprep.subr.mxu0 %v85
    %1454 = vmatpush1.msra.mxu0 %v84
    %1455 = vmatprep.subr.mxu0 %v89
    %1456 = vmatpush1.msra.mxu0 %v88
    %1457 = vmatprep.subr.mxu0 %v93
    %1458 = vmatpush1.msra.mxu0 %v92
    %1459 = vmatprep.subr.mxu0 %v97
    %1460 = vmatpush1.msra.mxu0 %v96
    %1461 = vmatprep.subr.mxu0 %v101
    %1462 = vmatpush1.msra.mxu0 %v100
    %1463 = vmatprep.subr.mxu0 %v105
    %1464 = vmatpush1.msra.mxu0 %v104
    %1465 = vmatprep.subr.mxu0 %v109
    %1466 = vmatpush1.msra.mxu0 %v108
    %1467 = vmatprep.subr.mxu0 %v113
    %1468 = vmatpush1.msra.mxu0 %v112
    %1469 = vmatprep.subr.mxu0 %v117
    %1470 = vmatpush1.msra.mxu0 %v116
    %1471 = vmatprep.subr.mxu0 %v121
    %1472 = vmatpush1.msra.mxu0 %v120
    %1473 = vmatprep.subr.mxu0 %v125
    %1474 = vmatpush1.msra.mxu0 %v124
    %1475 = vmatprep.subr.mxu0 %v129
    %1476 = vmatpush1.msra.mxu0 %v128
    %1477 = vmatprep.subr.mxu0 %v133
    %1478 = vmatpush1.msra.mxu0 %v132
    %1479 = vmatprep.subr.mxu0 %v137
    %1480 = vmatpush1.msra.mxu0 %v136
    %1481 = vmatprep.subr.mxu0 %v141
    %1482 = vmatpush1.msra.mxu0 %v140
    %1483 = vmatprep.subr.mxu0 %v145
    %1484 = vmatpush1.msra.mxu0 %v144
    %1485 = vmatprep.subr.mxu0 %v149
    %1486 = vmatpush1.msra.mxu0 %v148
    %1487 = vmatprep.subr.mxu0 %v153
    %1488 = vmatpush1.msra.mxu0 %v152
    %1489 = vmatprep.subr.mxu0 %v157
    %1490 = vmatpush1.msra.mxu0 %v156
    %1491 = vmatprep.subr.mxu0 %v161
    %1492 = vmatpush1.msra.mxu0 %v160
    %1493 = vmatprep.subr.mxu0 %v165
    %1494 = vmatpush1.msra.mxu0 %v164
    %1495 = vmatprep.subr.mxu0 %v169
    %1496 = vmatpush1.msra.mxu0 %v168
    %1497 = vmatprep.subr.mxu0 %v173
    %1498 = vmatpush1.msra.mxu0 %v172
    %1499 = vmatprep.subr.mxu0 %v177
    %1500 = vmatpush1.msra.mxu0 %v176
    %1501 = vmatprep.subr.mxu0 %v181
    %1502 = vmatpush1.msra.mxu0 %v180
    %1503 = vmatprep.subr.mxu0 %v185
    %1504 = vmatpush1.msra.mxu0 %v184
    %1505 = vmatprep.subr.mxu0 %v189
    %1506 = vmatpush1.msra.mxu0 %v188
    %1507 = vmatprep.subr.mxu0 %v193
    %1508 = vmatpush1.msra.mxu0 %v192
    %1509 = vmatprep.mubr.f32.mxu0 %v1370
    %1510 = vmatmul.mubr.f32.gmra.mrb[0].mxu0 %v1373
    %v1511 = vpop.f32.mrb[0].mxu0
    %v1512 = vadd.f32 %v210, %v1511
    %v1513 = vpop.f32.mrb[0].mxu0
    %v1514 = vadd.f32 %v214, %v1513
    %1515 = vdwg.mxu0
    %v1516 = vxor.u32 %v1441, 2147483648
    %v1517 = vmul.f32 %v1516, 1.442695
    %v1518 = vpow.pop %v1517
    %v1519 = vadd.f32 %v1518, 1.0
    %v1520 = vrcp.pop %v1519
    %v1521 = vmul.f32 1.0, %v1520
    %v1522 = vxor.u32 %v1443, 2147483648
    %v1523 = vmul.f32 %v1522, 1.442695
    %v1524 = vpow.pop %v1523
    %v1525 = vadd.f32 %v1524, 1.0
    %v1526 = vrcp.pop %v1525
    %v1527 = vmul.f32 1.0, %v1526
    %v1528 = vsub.f32 %v1521, 1.0
    %v1529 = vmul.f32 %v1528, %v1514
    %v1530 = vadd.f32 %v1512, %v1529
    %v1531 = vtanh.pop %v1530
    %v1532 = vsub.f32 1.0, %v1527
    %v1533 = vmul.f32 %v1532, %v1531
    %v1534 = vmul.f32 %v1527, %v1370
    %v1535 = vadd.f32 %v1533, %v1534
    %1536 = vst [vmem:[#allocation2 + $0x7] sm:$0x1] %v1535
    %1537 = vst [vmem:[#allocation10] sm:$0x1] %v1535
    %v1538 = vld [vmem:[#allocation2] sm:$0xff]
    %v1539 = vld [vmem:[#allocation8] sm:$0xff]
    %v1540 = vld [vmem:[#allocation8 + $0x8] sm:$0xff]
    %v1541 = vld [vmem:[#allocation8 + $0x10] sm:$0xff]
    %v1542 = vld [vmem:[#allocation8 + $0x18] sm:$0xff]
    %v1543 = vld [vmem:[#allocation8 + $0x20] sm:$0xff]
    %v1544 = vld [vmem:[#allocation8 + $0x28] sm:$0xff]
    %v1545 = vld [vmem:[#allocation8 + $0x30] sm:$0xff]
    %v1546 = vld [vmem:[#allocation8 + $0x38] sm:$0xff]
    %v1547 = vld [vmem:[#allocation8 + $0x40] sm:$0xff]
    %v1548 = vld [vmem:[#allocation8 + $0x48] sm:$0xff]
    %v1549 = vld [vmem:[#allocation8 + $0x50] sm:$0xff]
    %v1550 = vld [vmem:[#allocation8 + $0x58] sm:$0xff]
    %v1551 = vld [vmem:[#allocation8 + $0x60] sm:$0xff]
    %v1552 = vld [vmem:[#allocation8 + $0x68] sm:$0xff]
    %v1553 = vld [vmem:[#allocation8 + $0x70] sm:$0xff]
    %v1554 = vld [vmem:[#allocation8 + $0x78] sm:$0xff]
    %v1555 = vld [vmem:[#allocation8 + $0x80] sm:$0xff]
    %v1556 = vld [vmem:[#allocation8 + $0x88] sm:$0xff]
    %v1557 = vld [vmem:[#allocation8 + $0x90] sm:$0xff]
    %v1558 = vld [vmem:[#allocation8 + $0x98] sm:$0xff]
    %v1559 = vld [vmem:[#allocation8 + $0xa0] sm:$0xff]
    %v1560 = vld [vmem:[#allocation8 + $0xa8] sm:$0xff]
    %v1561 = vld [vmem:[#allocation8 + $0xb0] sm:$0xff]
    %v1562 = vld [vmem:[#allocation8 + $0xb8] sm:$0xff]
    %v1563 = vld [vmem:[#allocation8 + $0xc0] sm:$0xff]
    %v1564 = vld [vmem:[#allocation8 + $0xc8] sm:$0xff]
    %v1565 = vld [vmem:[#allocation8 + $0xd0] sm:$0xff]
    %v1566 = vld [vmem:[#allocation8 + $0xd8] sm:$0xff]
    %v1567 = vld [vmem:[#allocation8 + $0xe0] sm:$0xff]
    %v1568 = vld [vmem:[#allocation8 + $0xe8] sm:$0xff]
    %v1569 = vld [vmem:[#allocation8 + $0xf0] sm:$0xff]
    %v1570 = vld [vmem:[#allocation8 + $0xf8] sm:$0xff]
    %v1571 = vld [vmem:[%s5] sm:$0x3]
    %v1573 = vlaneseq
    %v1574 = vshrl.u32 %v1573, 7
    %v1575 = vsub.s32 0, %v1574
    %v1576 = vrot.slane %v1571, %v1575
    %v1577 = vlaneseq
    %v1578 = vshrl.u32 %v1577, 7
    %v1579 = vsub.s32 1, %v1578
    %v1580 = vrot.slane %v1571, %v1579
    %1583 = vmatprep.subr.mxu0 %v1540
    %1584 = vmatpush1.msra.mxu0 %v1539
    %1585 = vmatprep.subr.mxu0 %v1542
    %1586 = vmatpush1.msra.mxu0 %v1541
    %1587 = vmatprep.subr.mxu0 %v1544
    %1588 = vmatpush1.msra.mxu0 %v1543
    %1589 = vmatprep.subr.mxu0 %v1546
    %1590 = vmatpush1.msra.mxu0 %v1545
    %1591 = vmatprep.subr.mxu0 %v1548
    %1592 = vmatpush1.msra.mxu0 %v1547
    %1593 = vmatprep.subr.mxu0 %v1550
    %1594 = vmatpush1.msra.mxu0 %v1549
    %1595 = vmatprep.subr.mxu0 %v1552
    %1596 = vmatpush1.msra.mxu0 %v1551
    %1597 = vmatprep.subr.mxu0 %v1554
    %1598 = vmatpush1.msra.mxu0 %v1553
    %1599 = vmatprep.subr.mxu0 %v1556
    %1600 = vmatpush1.msra.mxu0 %v1555
    %1601 = vmatprep.subr.mxu0 %v1558
    %1602 = vmatpush1.msra.mxu0 %v1557
    %1603 = vmatprep.subr.mxu0 %v1560
    %1604 = vmatpush1.msra.mxu0 %v1559
    %1605 = vmatprep.subr.mxu0 %v1562
    %1606 = vmatpush1.msra.mxu0 %v1561
    %1607 = vmatprep.subr.mxu0 %v1564
    %1608 = vmatpush1.msra.mxu0 %v1563
    %1609 = vmatprep.subr.mxu0 %v1566
    %1610 = vmatpush1.msra.mxu0 %v1565
    %1611 = vmatprep.subr.mxu0 %v1568
    %1612 = vmatpush1.msra.mxu0 %v1567
    %1613 = vmatprep.subr.mxu0 %v1570
    %1614 = vmatpush1.msra.mxu0 %v1569
    %1615 = vmatprep.subr.mxu0 0.0
    %1616 = vmatpush1.msra.mxu0 0.0
    %1617 = vmatprep.subr.mxu0 0.0
    %1618 = vmatpush1.msra.mxu0 0.0
    %1619 = vmatprep.subr.mxu0 0.0
    %1620 = vmatpush1.msra.mxu0 0.0
    %1621 = vmatprep.subr.mxu0 0.0
    %1622 = vmatpush1.msra.mxu0 0.0
    %1623 = vmatprep.subr.mxu0 0.0
    %1624 = vmatpush1.msra.mxu0 0.0
    %1625 = vmatprep.subr.mxu0 0.0
    %1626 = vmatpush1.msra.mxu0 0.0
    %1627 = vmatprep.subr.mxu0 0.0
    %1628 = vmatpush1.msra.mxu0 0.0
    %1629 = vmatprep.subr.mxu0 0.0
    %1630 = vmatpush1.msra.mxu0 0.0
    %1631 = vmatprep.subr.mxu0 0.0
    %1632 = vmatpush1.msra.mxu0 0.0
    %1633 = vmatprep.subr.mxu0 0.0
    %1634 = vmatpush1.msra.mxu0 0.0
    %1635 = vmatprep.subr.mxu0 0.0
    %1636 = vmatpush1.msra.mxu0 0.0
    %1637 = vmatprep.subr.mxu0 0.0
    %1638 = vmatpush1.msra.mxu0 0.0
    %1639 = vmatprep.subr.mxu0 0.0
    %1640 = vmatpush1.msra.mxu0 0.0
    %1641 = vmatprep.subr.mxu0 0.0
    %1642 = vmatpush1.msra.mxu0 0.0
    %1643 = vmatprep.subr.mxu0 0.0
    %1644 = vmatpush1.msra.mxu0 0.0
    %1645 = vmatprep.subr.mxu0 0.0
    %1646 = vmatpush1.msra.mxu0 0.0
    %1647 = vmatprep.mubr.f32.mxu0 0.0
    %1648 = vmatmul.mubr.f32.gmra.mrb[0].mxu0 %v1538
    %v1649 = vpop.f32.mrb[0].mxu0
    %v1650 = vadd.f32 %v1576, %v1649
    %v1651 = vpop.f32.mrb[0].mxu0
    %v1652 = vadd.f32 %v1580, %v1651
    %1653 = vdwg.mxu0
    %v1654 = vmax.f32 %v1650, %v1652
    %1655 = vmax.xlane.f32.xlu0 %v1654
    %v1656 = vpop.xlane.xlu0 %1655
    %v1657 = vsub.f32 %v1650, %v1656
    %v1658 = vsub.f32 %v1652, %v1656
    %v1659 = vmul.f32 %v1657, 1.442695
    %v1660 = vpow.pop %v1659
    %v1661 = vmul.f32 %v1658, 1.442695
    %v1662 = vpow.pop %v1661
    %v1663 = vadd.f32 %v1660, %v1662
    %1664 = vadd.xlane.f32.xlu0 %v1663
    %v1665 = vpop.xlane.xlu0 %1664
    %v1666 = vlog2.pop %v1665
    %v1667 = vmul.f32 %v1666, 0.6931472
    %v1668 = vadd.f32 %v1667, %v1656
    %v1669 = vsub.f32 %v1650, %v1668
    %v1670 = vsub.f32 %v1652, %v1668
    %1671 = vst [vmem:[#allocation9] sm:$0xff] %v1669
    %1672 = vst [vmem:[#allocation9 + $0x8] sm:$0xff] %v1670
    // Predicated region
    $region38: #{tpu_custom_call.1} parent=1 // pred_check
      _
    $region39: #{tpu_custom_call.1} parent=1 // pred_check_branch
      %1674 = sbr.rel (0) target = $region41
    $region40: #{tpu_custom_call.1} parent=1 // pred_region
      %s1676 = ssub.s32 256, 256
      %1677 = vsyncadd [#allocation5], %s1676
      %s1679 = sshll.u32 [#allocation9], 4
      %s1680 = int_to_ptr.vmem [resolvable:$true] %s1679
      %1682 = dma.vmem_to_hbm [thread:$0]  %s1680, 256, %s6, [#allocation5]
    $region41: #{tpu_custom_call.1} parent=1 // pred_fallthru
      _
    // Predicated region
    $region42: #{tpu_custom_call.1} parent=1 // pred_check
      _
    $region43: #{tpu_custom_call.1} parent=1 // pred_check_branch
      %1684 = sbr.rel (0) target = $region45
    $region44: #{tpu_custom_call.1} parent=1 // pred_region
      %s1686 = ssub.s32 16, 16
      %1687 = vsyncadd [#allocation11], %s1686
      %s1689 = sshll.u32 [#allocation10], 4
      %s1690 = int_to_ptr.vmem [resolvable:$true] %s1689
      %1692 = dma.vmem_to_hbm [thread:$0]  %s1690, 16, %s7, [#allocation11]
    $region45: #{tpu_custom_call.1} parent=1 // pred_fallthru
      _
    // Predicated region
    $region46: #{tpu_custom_call.1} parent=1 // pred_check
      _
    $region47: #{tpu_custom_call.1} parent=1 // pred_check_branch
      %1694 = sbr.rel (0) target = $region49
    $region48: #{tpu_custom_call.1} parent=1 // pred_region
      %1695 = dma.done [#allocation5], 256
    $region49: #{tpu_custom_call.1} parent=1 // pred_fallthru
      _
    // Predicated region
    $region50: #{tpu_custom_call.1} parent=1 // pred_check
      _
    $region51: #{tpu_custom_call.1} parent=1 // pred_check_branch
      %1697 = sbr.rel (0) target = $region53
    $region52: #{tpu_custom_call.1} parent=1 // pred_region
      %1698 = dma.done [#allocation11], 16
    $region53: #{tpu_custom_call.1} parent=1 // pred_fallthru
      _
    %1699 = vsyncpa [#allocation4], 1
    %1700 = vsyncpa [#allocation7], 1
    %1701 = vsyncpa [#allocation5], 1
    %1702 = vsyncpa [#allocation11], 1

</llo_original>
